<compile_context>
chip_gen: v7x
topology: tpu7x:2x2x1
jax: 0.10.0
libtpu: 0.0.40
codegen_flags: <defaults>
</compile_context>

<pallas_src>
import jax
import jax.numpy as jnp
from jax.experimental import pallas as pl
from jax.experimental.pallas import tpu as pltpu

# ---------------- config ----------------
IN_DIM = 4                # (u, v, s, t) light-field coordinate
HIDDEN_DIM = 64           # MLP hidden width
N_HIDDEN_LAYERS = 2       # number of H->H hidden layers (4 linear layers total)
RGB_HIDDEN_DIM = 32
DEPTH_HIDDEN_DIM = 32
OUT_DIM = RGB_HIDDEN_DIM + DEPTH_HIDDEN_DIM   # field MLP output width
RGB_PAD = 8               # rgb rows padded 3 -> 8 (full sublane group)

TILE_M = 1024             # rays processed per grid step (lane axis)


def _neulf_kernel(x_ref, w0_ref, b0_ref, wh_ref, bh_ref, wf_ref, bf_ref,
                  o_ref):
    x = x_ref[...]                                      # (IN_DIM, TM) f32

    # Input layer on the VPU: K=4 would fill only a sliver of the MXU, so do
    # 4 broadcast FMAs instead (VALU has plenty of slack here).
    h = b0_ref[...]                                     # (H, 1) f32
    for k in range(IN_DIM):
        h = h + w0_ref[:, k:k + 1] * x[k:k + 1, :]      # (H,1)*(1,TM)->(H,TM)
    h = jnp.maximum(h, 0.0)                             # ReLU, (H, TM) f32

    # Hidden layers: bf16 MXU matmuls with f32 accumulation.
    for l in range(N_HIDDEN_LAYERS):
        h = jnp.dot(wh_ref[l], h.astype(jnp.bfloat16),
                    preferred_element_type=jnp.float32)
        h = jnp.maximum(h + bh_ref[l], 0.0)             # (H, TM) f32

    # Fused (field output layer + rgb head), then sigmoid.
    rgb = jnp.dot(wf_ref[...], h.astype(jnp.bfloat16),
                  preferred_element_type=jnp.float32) + bf_ref[...]
    o_ref[...] = jax.nn.sigmoid(rgb).astype(o_ref.dtype)   # (RGB_PAD, TM)


def _resident(arr):
    """BlockSpec that keeps a (small) parameter fully VMEM-resident."""
    r = arr.ndim
    return pl.BlockSpec(arr.shape, lambda i, r=r: (0,) * r)


@jax.jit
def neulf_forward(coords, params):
    """coords: (N, IN_DIM) f32. Returns rgb: (N, 3) f32."""
    n = coords.shape[0]
    w0, b0, wh, bh, wout, bout, wrgb, brgb = params

    # ---- wrapper-side algebraic head fusion (exact, f32) ----
    # rgb = sigmoid((h @ wout + bout)[:, :R] @ wrgb + brgb)
    #     = sigmoid(h @ (wout[:, :R] @ wrgb) + (bout[:, :R] @ wrgb + brgb))
    w_fused = wout[:, :RGB_HIDDEN_DIM] @ wrgb            # (H, 3)
    b_fused = bout[:, :RGB_HIDDEN_DIM] @ wrgb + brgb     # (1, 3)

    # ---- feature-major, lane-dense layouts ----
    x_t = coords.T                                       # (IN_DIM, N) f32
    w0_t = w0.T                                          # (H, IN_DIM) f32 (VPU)
    b0_t = b0.T                                          # (H, 1) f32
    wh_t = jnp.transpose(wh, (0, 2, 1)).astype(jnp.bfloat16)   # (L, H, H)
    bh_t = jnp.transpose(bh, (0, 2, 1))                  # (L, H, 1) f32
    wf_t = jnp.concatenate(
        [w_fused.T, jnp.zeros((RGB_PAD - 3, HIDDEN_DIM), w_fused.dtype)],
        axis=0).astype(jnp.bfloat16)                     # (RGB_PAD, H)
    bf_t = jnp.concatenate(
        [b_fused.T, jnp.zeros((RGB_PAD - 3, 1), b_fused.dtype)],
        axis=0)                                          # (RGB_PAD, 1) f32

    # ---- pad the ray axis so any N works with the large tile ----
    n_blocks = pl.cdiv(n, TILE_M)
    n_pad = n_blocks * TILE_M
    if n_pad != n:
        x_t = jnp.pad(x_t, ((0, 0), (0, n_pad - n)))

    out_t = pl.pallas_call(
        _neulf_kernel,
        out_shape=jax.ShapeDtypeStruct((RGB_PAD, n_pad), jnp.float32),
        grid_spec=pltpu.PrefetchScalarGridSpec(
            num_scalar_prefetch=0,
            grid=(n_blocks,),
            in_specs=[
                pl.BlockSpec((IN_DIM, TILE_M), lambda i: (0, i)),  # coords tile
                _resident(w0_t), _resident(b0_t),                  # input layer
                _resident(wh_t), _resident(bh_t),                  # hidden layers
                _resident(wf_t), _resident(bf_t),                  # fused rgb head
            ],
            out_specs=pl.BlockSpec((RGB_PAD, TILE_M), lambda i: (0, i)),
        ),
        compiler_params=pltpu.CompilerParams(
            dimension_semantics=("parallel",)),
    )(x_t, w0_t, b0_t, wh_t, bh_t, wf_t, bf_t)

    # back to (N, 3) ray-major
    return out_t[:3, :n].T


def init_params(key):
    """Deterministic synthetic parameter init (shapes from the module __init__)."""
    ks = jax.random.split(key, 8)
    scale = 0.1
    w0 = scale * jax.random.normal(ks[0], (IN_DIM, HIDDEN_DIM), jnp.float32)
    b0 = scale * jax.random.normal(ks[1], (1, HIDDEN_DIM), jnp.float32)
    wh = scale * jax.random.normal(
        ks[2], (N_HIDDEN_LAYERS, HIDDEN_DIM, HIDDEN_DIM), jnp.float32)
    bh = scale * jax.random.normal(
        ks[3], (N_HIDDEN_LAYERS, 1, HIDDEN_DIM), jnp.float32)
    wout = scale * jax.random.normal(ks[4], (HIDDEN_DIM, OUT_DIM), jnp.float32)
    bout = scale * jax.random.normal(ks[5], (1, OUT_DIM), jnp.float32)
    wrgb = scale * jax.random.normal(ks[6], (RGB_HIDDEN_DIM, 3), jnp.float32)
    brgb = scale * jax.random.normal(ks[7], (1, 3), jnp.float32)
    return (w0, b0, wh, bh, wout, bout, wrgb, brgb)


def neulf_reference(coords, params):
    """Pure-JAX f32 reference mirroring the PyTorch forward()."""
    w0, b0, wh, bh, wout, bout, wrgb, brgb = params
    h = jnp.maximum(coords @ w0 + b0, 0.0)
    for l in range(N_HIDDEN_LAYERS):
        h = jnp.maximum(h @ wh[l] + bh[l], 0.0)
    feats = h @ wout + bout
    return jax.nn.sigmoid(feats[:, :RGB_HIDDEN_DIM] @ wrgb + brgb)


if __name__ == "__main__":
    key = jax.random.PRNGKey(0)
    k_param, k_coord = jax.random.split(key)

    params = init_params(k_param)
    N = 8000  # rays; not a multiple of TILE_M -> exercises the padded tail
    coords = jax.random.uniform(k_coord, (N, IN_DIM), jnp.float32,
                                minval=-1.0, maxval=1.0)

    rgb = jax.block_until_ready(neulf_forward(coords, params))

    # correctness check vs pure-f32 reference (kernel matmuls are bf16-in /
    # f32-accumulate, so use a matching tolerance)
    ref = neulf_reference(coords, params)
    assert rgb.shape == (N, 3)
    max_err = float(jnp.max(jnp.abs(rgb - ref)))
    assert max_err < 2e-2, f"mismatch vs reference, max_err={max_err}"

    # TODO(synk): full_query()'s depth head (depth_linear + sigmoid) is not
    # exercised by forward(); it would be one more fused (H,1) row in wf/bf
    # using wout[:, RGB:RGB+DEPTH] in this same kernel.
    print("KERNEL_OK")
</pallas_src>

<mosaic_0001>
module attributes {stable_mosaic.version = 11 : i64} {
  func.func @_neulf_kernel(%arg0: i32, %arg1: memref<4x1024xf32, #tpu.memory_space<vmem>>, %arg2: memref<64x4xf32, #tpu.memory_space<vmem>>, %arg3: memref<64x1xf32, #tpu.memory_space<vmem>>, %arg4: memref<2x64x64xbf16, #tpu.memory_space<vmem>>, %arg5: memref<2x64x1xf32, #tpu.memory_space<vmem>>, %arg6: memref<8x64xbf16, #tpu.memory_space<vmem>>, %arg7: memref<8x1xf32, #tpu.memory_space<vmem>>, %arg8: memref<8x1024xf32, #tpu.memory_space<vmem>>) attributes {dimension_semantics = [#tpu.dimension_semantics<parallel>], iteration_bounds = array<i64: 8>, scalar_prefetch = 0 : i64, scratch_operands = 0 : i64, tpu.core_type = #tpu.core_type<tc>, window_params = [{transform_indices = @transform_0, window_bounds = array<i64: 4, 1024>}, {pipeline_mode = #tpu.pipeline_mode<synchronous>, transform_indices = @transform_1, window_bounds = array<i64: 64, 4>}, {pipeline_mode = #tpu.pipeline_mode<synchronous>, transform_indices = @transform_2, window_bounds = array<i64: 64, 1>}, {pipeline_mode = #tpu.pipeline_mode<synchronous>, transform_indices = @transform_3, window_bounds = array<i64: 2, 64, 64>}, {pipeline_mode = #tpu.pipeline_mode<synchronous>, transform_indices = @transform_4, window_bounds = array<i64: 2, 64, 1>}, {pipeline_mode = #tpu.pipeline_mode<synchronous>, transform_indices = @transform_5, window_bounds = array<i64: 8, 64>}, {pipeline_mode = #tpu.pipeline_mode<synchronous>, transform_indices = @transform_6, window_bounds = array<i64: 8, 1>}, {transform_indices = @transform_7, window_bounds = array<i64: 8, 1024>}]} {
    %c0 = arith.constant 0 : index
    %c0_0 = arith.constant 0 : index
    %0 = vector.load %arg1[%c0, %c0_0] : memref<4x1024xf32, #tpu.memory_space<vmem>>, vector<4x1024xf32>
    %c0_1 = arith.constant 0 : index
    %c0_2 = arith.constant 0 : index
    %1 = vector.load %arg3[%c0_1, %c0_2] : memref<64x1xf32, #tpu.memory_space<vmem>>, vector<64x1xf32>
    %c0_3 = arith.constant 0 : index
    %c0_4 = arith.constant 0 : index
    %2 = vector.load %arg2[%c0_3, %c0_4] : memref<64x4xf32, #tpu.memory_space<vmem>>, vector<64x1xf32>
    %3 = vector.extract_strided_slice %0 {offsets = [0, 0], sizes = [1, 1024], strides = [1, 1]} : vector<4x1024xf32> to vector<1x1024xf32>
    %4 = vector.broadcast %2 : vector<64x1xf32> to vector<64x1024xf32>
    %5 = vector.broadcast %3 : vector<1x1024xf32> to vector<64x1024xf32>
    %6 = arith.mulf %4, %5 : vector<64x1024xf32>
    %7 = vector.broadcast %1 : vector<64x1xf32> to vector<64x1024xf32>
    %8 = arith.addf %7, %6 : vector<64x1024xf32>
    %c0_5 = arith.constant 0 : index
    %c1 = arith.constant 1 : index
    %9 = vector.load %arg2[%c0_5, %c1] : memref<64x4xf32, #tpu.memory_space<vmem>>, vector<64x1xf32>
    %10 = vector.extract_strided_slice %0 {offsets = [1, 0], sizes = [1, 1024], strides = [1, 1]} : vector<4x1024xf32> to vector<1x1024xf32>
    %11 = vector.broadcast %9 : vector<64x1xf32> to vector<64x1024xf32>
    %12 = vector.broadcast %10 : vector<1x1024xf32> to vector<64x1024xf32>
    %13 = arith.mulf %11, %12 : vector<64x1024xf32>
    %14 = arith.addf %8, %13 : vector<64x1024xf32>
    %c0_6 = arith.constant 0 : index
    %c2 = arith.constant 2 : index
    %15 = vector.load %arg2[%c0_6, %c2] : memref<64x4xf32, #tpu.memory_space<vmem>>, vector<64x1xf32>
    %16 = vector.extract_strided_slice %0 {offsets = [2, 0], sizes = [1, 1024], strides = [1, 1]} : vector<4x1024xf32> to vector<1x1024xf32>
    %17 = vector.broadcast %15 : vector<64x1xf32> to vector<64x1024xf32>
    %18 = vector.broadcast %16 : vector<1x1024xf32> to vector<64x1024xf32>
    %19 = arith.mulf %17, %18 : vector<64x1024xf32>
    %20 = arith.addf %14, %19 : vector<64x1024xf32>
    %c0_7 = arith.constant 0 : index
    %c3 = arith.constant 3 : index
    %21 = vector.load %arg2[%c0_7, %c3] : memref<64x4xf32, #tpu.memory_space<vmem>>, vector<64x1xf32>
    %22 = vector.extract_strided_slice %0 {offsets = [3, 0], sizes = [1, 1024], strides = [1, 1]} : vector<4x1024xf32> to vector<1x1024xf32>
    %23 = vector.broadcast %21 : vector<64x1xf32> to vector<64x1024xf32>
    %24 = vector.broadcast %22 : vector<1x1024xf32> to vector<64x1024xf32>
    %25 = arith.mulf %23, %24 : vector<64x1024xf32>
    %26 = arith.addf %20, %25 : vector<64x1024xf32>
    %cst = arith.constant 0.000000e+00 : f32
    %27 = vector.broadcast %cst : f32 to vector<64x1024xf32>
    %28 = arith.maximumf %26, %27 : vector<64x1024xf32>
    %c0_8 = arith.constant 0 : index
    %c0_9 = arith.constant 0 : index
    %c0_10 = arith.constant 0 : index
    %29 = vector.load %arg4[%c0_8, %c0_9, %c0_10] : memref<2x64x64xbf16, #tpu.memory_space<vmem>>, vector<1x64x64xbf16>
    %30 = vector.shape_cast %29 : vector<1x64x64xbf16> to vector<64x64xbf16>
    %31 = arith.truncf %28 : vector<64x1024xf32> to vector<64x1024xbf16>
    %cst_11 = arith.constant dense<0.000000e+00> : vector<64x1024xf32>
    %32 = tpu.matmul %30, %31, %cst_11 {dimension_numbers = #tpu.dot_dimension_numbers<[1], [0], [0], [1], [0, 0, 1, 1], [], []>} : vector<64x64xbf16>, vector<64x1024xbf16>, vector<64x1024xf32> -> vector<64x1024xf32>
    %c0_12 = arith.constant 0 : index
    %c0_13 = arith.constant 0 : index
    %c0_14 = arith.constant 0 : index
    %33 = vector.load %arg5[%c0_12, %c0_13, %c0_14] : memref<2x64x1xf32, #tpu.memory_space<vmem>>, vector<1x64x1xf32>
    %34 = vector.shape_cast %33 : vector<1x64x1xf32> to vector<64x1xf32>
    %35 = vector.broadcast %34 : vector<64x1xf32> to vector<64x1024xf32>
    %36 = arith.addf %32, %35 : vector<64x1024xf32>
    %cst_15 = arith.constant 0.000000e+00 : f32
    %37 = vector.broadcast %cst_15 : f32 to vector<64x1024xf32>
    %38 = arith.maximumf %36, %37 : vector<64x1024xf32>
    %c1_16 = arith.constant 1 : index
    %c0_17 = arith.constant 0 : index
    %c0_18 = arith.constant 0 : index
    %39 = vector.load %arg4[%c1_16, %c0_17, %c0_18] : memref<2x64x64xbf16, #tpu.memory_space<vmem>>, vector<1x64x64xbf16>
    %40 = vector.shape_cast %39 : vector<1x64x64xbf16> to vector<64x64xbf16>
    %41 = arith.truncf %38 : vector<64x1024xf32> to vector<64x1024xbf16>
    %cst_19 = arith.constant dense<0.000000e+00> : vector<64x1024xf32>
    %42 = tpu.matmul %40, %41, %cst_19 {dimension_numbers = #tpu.dot_dimension_numbers<[1], [0], [0], [1], [0, 0, 1, 1], [], []>} : vector<64x64xbf16>, vector<64x1024xbf16>, vector<64x1024xf32> -> vector<64x1024xf32>
    %c1_20 = arith.constant 1 : index
    %c0_21 = arith.constant 0 : index
    %c0_22 = arith.constant 0 : index
    %43 = vector.load %arg5[%c1_20, %c0_21, %c0_22] : memref<2x64x1xf32, #tpu.memory_space<vmem>>, vector<1x64x1xf32>
    %44 = vector.shape_cast %43 : vector<1x64x1xf32> to vector<64x1xf32>
    %45 = vector.broadcast %44 : vector<64x1xf32> to vector<64x1024xf32>
    %46 = arith.addf %42, %45 : vector<64x1024xf32>
    %cst_23 = arith.constant 0.000000e+00 : f32
    %47 = vector.broadcast %cst_23 : f32 to vector<64x1024xf32>
    %48 = arith.maximumf %46, %47 : vector<64x1024xf32>
    %c0_24 = arith.constant 0 : index
    %c0_25 = arith.constant 0 : index
    %49 = vector.load %arg6[%c0_24, %c0_25] : memref<8x64xbf16, #tpu.memory_space<vmem>>, vector<8x64xbf16>
    %50 = arith.truncf %48 : vector<64x1024xf32> to vector<64x1024xbf16>
    %cst_26 = arith.constant dense<0.000000e+00> : vector<8x1024xf32>
    %51 = tpu.matmul %49, %50, %cst_26 {dimension_numbers = #tpu.dot_dimension_numbers<[1], [0], [0], [1], [0, 0, 1, 1], [], []>} : vector<8x64xbf16>, vector<64x1024xbf16>, vector<8x1024xf32> -> vector<8x1024xf32>
    %c0_27 = arith.constant 0 : index
    %c0_28 = arith.constant 0 : index
    %52 = vector.load %arg7[%c0_27, %c0_28] : memref<8x1xf32, #tpu.memory_space<vmem>>, vector<8x1xf32>
    %53 = vector.broadcast %52 : vector<8x1xf32> to vector<8x1024xf32>
    %54 = arith.addf %51, %53 : vector<8x1024xf32>
    %55 = arith.negf %54 : vector<8x1024xf32>
    %56 = math.exp %55 : vector<8x1024xf32>
    %cst_29 = arith.constant 1.000000e+00 : f32
    %57 = vector.broadcast %cst_29 : f32 to vector<8x1024xf32>
    %58 = arith.addf %57, %56 : vector<8x1024xf32>
    %59 = arith.divf %57, %58 : vector<8x1024xf32>
    %c0_30 = arith.constant 0 : index
    %c0_31 = arith.constant 0 : index
    %60 = vector.load %arg8[%c0_30, %c0_31] : memref<8x1024xf32, #tpu.memory_space<vmem>>, vector<8x1024xf32>
    tpu.vector_store %arg8[%c0_30, %c0_31], %59 {strides = array<i32>} : memref<8x1024xf32, #tpu.memory_space<vmem>>, vector<8x1024xf32>,
    return
  }
  func.func @transform_0(%arg0: i32) -> (i32, i32) {
    %c0_i32 = arith.constant 0 : i32
    %c0_i32_0 = arith.constant 0 : i32
    return %c0_i32, %arg0 : i32, i32
  }
  func.func @transform_1(%arg0: i32) -> (i32, i32) {
    %c0_i32 = arith.constant 0 : i32
    %c0_i32_0 = arith.constant 0 : i32
    %c0_i32_1 = arith.constant 0 : i32
    return %c0_i32, %c0_i32_0 : i32, i32
  }
  func.func @transform_2(%arg0: i32) -> (i32, i32) {
    %c0_i32 = arith.constant 0 : i32
    %c0_i32_0 = arith.constant 0 : i32
    %c0_i32_1 = arith.constant 0 : i32
    return %c0_i32, %c0_i32_0 : i32, i32
  }
  func.func @transform_3(%arg0: i32) -> (i32, i32, i32) {
    %c0_i32 = arith.constant 0 : i32
    %c0_i32_0 = arith.constant 0 : i32
    %c0_i32_1 = arith.constant 0 : i32
    %c0_i32_2 = arith.constant 0 : i32
    return %c0_i32, %c0_i32_0, %c0_i32_1 : i32, i32, i32
  }
  func.func @transform_4(%arg0: i32) -> (i32, i32, i32) {
    %c0_i32 = arith.constant 0 : i32
    %c0_i32_0 = arith.constant 0 : i32
    %c0_i32_1 = arith.constant 0 : i32
    %c0_i32_2 = arith.constant 0 : i32
    return %c0_i32, %c0_i32_0, %c0_i32_1 : i32, i32, i32
  }
  func.func @transform_5(%arg0: i32) -> (i32, i32) {
    %c0_i32 = arith.constant 0 : i32
    %c0_i32_0 = arith.constant 0 : i32
    %c0_i32_1 = arith.constant 0 : i32
    return %c0_i32, %c0_i32_0 : i32, i32
  }
  func.func @transform_6(%arg0: i32) -> (i32, i32) {
    %c0_i32 = arith.constant 0 : i32
    %c0_i32_0 = arith.constant 0 : i32
    %c0_i32_1 = arith.constant 0 : i32
    return %c0_i32, %c0_i32_0 : i32, i32
  }
  func.func @transform_7(%arg0: i32) -> (i32, i32) {
    %c0_i32 = arith.constant 0 : i32
    %c0_i32_0 = arith.constant 0 : i32
    return %c0_i32, %arg0 : i32, i32
  }
}

</mosaic_0001>

<llo_original>
// kernel: neulf_forward.1
$region0: #{neulf_forward.1}
  #allocation0 [shape = 'u32[]', space=smem, size = 0x4, offset = 0x4, fixed_abs, tag = 'smem constant byte address 0x4 - core index']
  #allocation1 [shape = 'u32[144,128]{1,0:T(1,128)}', space=vmem, size = 0x12000, scoped, tag = 'internal scratch']
  %s0 = inlined_call_operand.vmem [shape: f32[4,8192], index: 0, kind: input, shape index: {}]
  %s1 = inlined_call_operand.vmem [shape: f32[64,4], index: 1, kind: input, shape index: {}]
  %s2 = inlined_call_operand.vmem [shape: f32[64,1], index: 2, kind: input, shape index: {}]
  %s3 = inlined_call_operand.vmem [shape: bf16[2,64,64], index: 3, kind: input, shape index: {}]
  %s4 = inlined_call_operand.vmem [shape: f32[2,64,1], index: 4, kind: input, shape index: {}]
  %s5 = inlined_call_operand.vmem [shape: bf16[8,64], index: 5, kind: input, shape index: {}]
  %s6 = inlined_call_operand.vmem [shape: f32[8,1], index: 6, kind: input, shape index: {}]
  %s7 = inlined_call_operand.vmem [shape: f32[8,8192], index: 7, kind: output, shape index: {}]
  %s8 = sld [smem:[#allocation0]]
  $region61: #{neulf_forward.1} parent=0
    _
  %s10 = ssub.s32 1, %s8
  %s11 = scalar_select 0, %s10, %s8
  loop: start=0, step=1, limit=10
  $region2: #{neulf_forward.1} parent=0 // loop_pre_header
    _
  $region3: #{neulf_forward.1} parent=0 // loop_header
    %s13 = sphi 0, %s17
    %p14 = scmp.ge.s32.totalorder %s13, 10
    %s23 = sphi 0, %s25
    %s26 = sphi 0, %s23
    %s27 = sphi 0, %s26
    %s43 = sphi 0, %s27
    %s47 = sphi 0, %s47
    %s49 = sphi 0, %s47
    %s50 = sphi 0, %s49
    %s64 = sphi 0, %s50
    %s68 = sphi 0, %s68
    %s70 = sphi 0, %s68
    %s71 = sphi 0, %s70
    %s85 = sphi 0, %s71
    %s89 = sphi 0, %s89
    %s91 = sphi 0, %s89
    %s92 = sphi 0, %s91
    %s106 = sphi 0, %s92
    %s110 = sphi 0, %s110
    %s112 = sphi 0, %s110
    %s113 = sphi 0, %s112
    %s127 = sphi 0, %s113
    %s131 = sphi 0, %s131
    %s133 = sphi 0, %s131
    %s134 = sphi 0, %s133
    %s148 = sphi 0, %s134
    %s152 = sphi 0, %s152
    %s154 = sphi 0, %s152
    %s155 = sphi 0, %s154
    %s169 = sphi 0, %s155
    %s175 = sphi 0, %s177
    %s178 = sphi 0, %s175
    %s179 = sphi 0, %s178
    %s195 = sphi 0, %s179
  $region4: #{neulf_forward.1} parent=0 // loop_header_branch
    %16 = sbr.rel (%p14) target = $region8
  $region5: #{neulf_forward.1} parent=0 // loop_body
    %s18 = ssub.s32 %s13, 1
    %s19 = ssub.s32 %s13, 2
    %s20 = sadd.s32 %s13, 1
    %s21 = ssub.s32 %s13, %s20
    %p22 = scmp.eq.s32.totalorder %s21, 0
    %s24 = sadd.s32 %s23, 1
    %s25 = scalar_select %p22, %s23, %s24
    %p28 = pneg %p22
    %p29 = scmp.eq.s32.totalorder %s13, 7
    %p30 = por %p28, %p29
    %p31 = scmp.ne.s32.totalorder %s23, %s26
    %p32 = scmp.eq.s32.totalorder %s13, 0
    %p33 = por %p31, %p32
    %p34 = scmp.ne.s32.totalorder %s23, %s26
    %p35 = scmp.eq.s32.totalorder %s18, 7
    %p36 = por %p34, %p35
    %p37 = scmp.ne.s32.totalorder %s26, %s27
    %p38 = scmp.eq.s32.totalorder %s18, 0
    %p39 = por %p37, %p38
    %p40 = scmp.ne.s32.totalorder %s26, %s27
    %p41 = scmp.eq.s32.totalorder %s19, 7
    %p42 = por %p40, %p41
    %p44 = scmp.ne.s32.totalorder %s27, %s43
    %p45 = scmp.eq.s32.totalorder %s19, 0
    %p46 = por %p44, %p45
    %s48 = sadd.s32 %s47, 1
    %p51 = scmp.eq.s32.totalorder %s13, 7
    %p52 = scmp.ne.s32.totalorder %s47, %s49
    %p53 = scmp.eq.s32.totalorder %s13, 0
    %p54 = por %p52, %p53
    %p55 = scmp.ne.s32.totalorder %s47, %s49
    %p56 = scmp.eq.s32.totalorder %s18, 7
    %p57 = por %p55, %p56
    %p58 = scmp.ne.s32.totalorder %s49, %s50
    %p59 = scmp.eq.s32.totalorder %s18, 0
    %p60 = por %p58, %p59
    %p61 = scmp.ne.s32.totalorder %s49, %s50
    %p62 = scmp.eq.s32.totalorder %s19, 7
    %p63 = por %p61, %p62
    %p65 = scmp.ne.s32.totalorder %s50, %s64
    %p66 = scmp.eq.s32.totalorder %s19, 0
    %p67 = por %p65, %p66
    %s69 = sadd.s32 %s68, 1
    %p72 = scmp.eq.s32.totalorder %s13, 7
    %p73 = scmp.ne.s32.totalorder %s68, %s70
    %p74 = scmp.eq.s32.totalorder %s13, 0
    %p75 = por %p73, %p74
    %p76 = scmp.ne.s32.totalorder %s68, %s70
    %p77 = scmp.eq.s32.totalorder %s18, 7
    %p78 = por %p76, %p77
    %p79 = scmp.ne.s32.totalorder %s70, %s71
    %p80 = scmp.eq.s32.totalorder %s18, 0
    %p81 = por %p79, %p80
    %p82 = scmp.ne.s32.totalorder %s70, %s71
    %p83 = scmp.eq.s32.totalorder %s19, 7
    %p84 = por %p82, %p83
    %p86 = scmp.ne.s32.totalorder %s71, %s85
    %p87 = scmp.eq.s32.totalorder %s19, 0
    %p88 = por %p86, %p87
    %s90 = sadd.s32 %s89, 1
    %p93 = scmp.eq.s32.totalorder %s13, 7
    %p94 = scmp.ne.s32.totalorder %s89, %s91
    %p95 = scmp.eq.s32.totalorder %s13, 0
    %p96 = por %p94, %p95
    %p97 = scmp.ne.s32.totalorder %s89, %s91
    %p98 = scmp.eq.s32.totalorder %s18, 7
    %p99 = por %p97, %p98
    %p100 = scmp.ne.s32.totalorder %s91, %s92
    %p101 = scmp.eq.s32.totalorder %s18, 0
    %p102 = por %p100, %p101
    %p103 = scmp.ne.s32.totalorder %s91, %s92
    %p104 = scmp.eq.s32.totalorder %s19, 7
    %p105 = por %p103, %p104
    %p107 = scmp.ne.s32.totalorder %s92, %s106
    %p108 = scmp.eq.s32.totalorder %s19, 0
    %p109 = por %p107, %p108
    %s111 = sadd.s32 %s110, 1
    %p114 = scmp.eq.s32.totalorder %s13, 7
    %p115 = scmp.ne.s32.totalorder %s110, %s112
    %p116 = scmp.eq.s32.totalorder %s13, 0
    %p117 = por %p115, %p116
    %p118 = scmp.ne.s32.totalorder %s110, %s112
    %p119 = scmp.eq.s32.totalorder %s18, 7
    %p120 = por %p118, %p119
    %p121 = scmp.ne.s32.totalorder %s112, %s113
    %p122 = scmp.eq.s32.totalorder %s18, 0
    %p123 = por %p121, %p122
    %p124 = scmp.ne.s32.totalorder %s112, %s113
    %p125 = scmp.eq.s32.totalorder %s19, 7
    %p126 = por %p124, %p125
    %p128 = scmp.ne.s32.totalorder %s113, %s127
    %p129 = scmp.eq.s32.totalorder %s19, 0
    %p130 = por %p128, %p129
    %s132 = sadd.s32 %s131, 1
    %p135 = scmp.eq.s32.totalorder %s13, 7
    %p136 = scmp.ne.s32.totalorder %s131, %s133
    %p137 = scmp.eq.s32.totalorder %s13, 0
    %p138 = por %p136, %p137
    %p139 = scmp.ne.s32.totalorder %s131, %s133
    %p140 = scmp.eq.s32.totalorder %s18, 7
    %p141 = por %p139, %p140
    %p142 = scmp.ne.s32.totalorder %s133, %s134
    %p143 = scmp.eq.s32.totalorder %s18, 0
    %p144 = por %p142, %p143
    %p145 = scmp.ne.s32.totalorder %s133, %s134
    %p146 = scmp.eq.s32.totalorder %s19, 7
    %p147 = por %p145, %p146
    %p149 = scmp.ne.s32.totalorder %s134, %s148
    %p150 = scmp.eq.s32.totalorder %s19, 0
    %p151 = por %p149, %p150
    %s153 = sadd.s32 %s152, 1
    %p156 = scmp.eq.s32.totalorder %s13, 7
    %p157 = scmp.ne.s32.totalorder %s152, %s154
    %p158 = scmp.eq.s32.totalorder %s13, 0
    %p159 = por %p157, %p158
    %p160 = scmp.ne.s32.totalorder %s152, %s154
    %p161 = scmp.eq.s32.totalorder %s18, 7
    %p162 = por %p160, %p161
    %p163 = scmp.ne.s32.totalorder %s154, %s155
    %p164 = scmp.eq.s32.totalorder %s18, 0
    %p165 = por %p163, %p164
    %p166 = scmp.ne.s32.totalorder %s154, %s155
    %p167 = scmp.eq.s32.totalorder %s19, 7
    %p168 = por %p166, %p167
    %p170 = scmp.ne.s32.totalorder %s155, %s169
    %p171 = scmp.eq.s32.totalorder %s19, 0
    %p172 = por %p170, %p171
    %s173 = ssub.s32 %s13, %s20
    %p174 = scmp.eq.s32.totalorder %s173, 0
    %s176 = sadd.s32 %s175, 1
    %s177 = scalar_select %p174, %s175, %s176
    %p180 = pneg %p174
    %p181 = scmp.eq.s32.totalorder %s13, 7
    %p182 = por %p180, %p181
    %p183 = scmp.ne.s32.totalorder %s175, %s178
    %p184 = scmp.eq.s32.totalorder %s13, 0
    %p185 = por %p183, %p184
    %p186 = scmp.ne.s32.totalorder %s175, %s178
    %p187 = scmp.eq.s32.totalorder %s18, 7
    %p188 = por %p186, %p187
    %p189 = scmp.ne.s32.totalorder %s178, %s179
    %p190 = scmp.eq.s32.totalorder %s18, 0
    %p191 = por %p189, %p190
    %p192 = scmp.ne.s32.totalorder %s178, %s179
    %p193 = scmp.eq.s32.totalorder %s19, 7
    %p194 = por %p192, %p193
    %p196 = scmp.ne.s32.totalorder %s179, %s195
    %p197 = scmp.eq.s32.totalorder %s19, 0
    %p198 = por %p196, %p197
    %p199 = scmp.le.s32.totalorder 1, %s13
    %p200 = scmp.lt.s32.totalorder %s13, 9
    %p201 = pnand %p199, %p200
    %p202 = pneg %p201
    // Predicated region
    $region9: #{neulf_forward.1} parent=5 // pred_check
      _
    $region10: #{neulf_forward.1} parent=5 // pred_check_branch
      %204 = sbr.rel (%p201) target = $region12
    $region11: #{neulf_forward.1} parent=5 // pred_region
      %s205 = ssub.s32 %s13, 1
      // Predicated region
      $region13: #{neulf_forward.1} parent=11 // pred_check
        %p206 = pneg %p60
      $region14: #{neulf_forward.1} parent=11 // pred_check_branch
        %208 = sbr.rel (%p206) target = $region16
      $region15: #{neulf_forward.1} parent=11 // pred_region
        _
      $region16: #{neulf_forward.1} parent=11 // pred_fallthru
        _
      // Predicated region
      $region17: #{neulf_forward.1} parent=11 // pred_check
        %p209 = pneg %p81
      $region18: #{neulf_forward.1} parent=11 // pred_check_branch
        %211 = sbr.rel (%p209) target = $region20
      $region19: #{neulf_forward.1} parent=11 // pred_region
        _
      $region20: #{neulf_forward.1} parent=11 // pred_fallthru
        _
      // Predicated region
      $region21: #{neulf_forward.1} parent=11 // pred_check
        %p212 = pneg %p102
      $region22: #{neulf_forward.1} parent=11 // pred_check_branch
        %214 = sbr.rel (%p212) target = $region24
      $region23: #{neulf_forward.1} parent=11 // pred_region
        _
      $region24: #{neulf_forward.1} parent=11 // pred_fallthru
        _
      // Predicated region
      $region25: #{neulf_forward.1} parent=11 // pred_check
        %p215 = pneg %p123
      $region26: #{neulf_forward.1} parent=11 // pred_check_branch
        %217 = sbr.rel (%p215) target = $region28
      $region27: #{neulf_forward.1} parent=11 // pred_region
        _
      $region28: #{neulf_forward.1} parent=11 // pred_fallthru
        _
      // Predicated region
      $region29: #{neulf_forward.1} parent=11 // pred_check
        %p218 = pneg %p144
      $region30: #{neulf_forward.1} parent=11 // pred_check_branch
        %220 = sbr.rel (%p218) target = $region32
      $region31: #{neulf_forward.1} parent=11 // pred_region
        _
      $region32: #{neulf_forward.1} parent=11 // pred_fallthru
        _
      // Predicated region
      $region33: #{neulf_forward.1} parent=11 // pred_check
        %p221 = pneg %p165
      $region34: #{neulf_forward.1} parent=11 // pred_check_branch
        %223 = sbr.rel (%p221) target = $region36
      $region35: #{neulf_forward.1} parent=11 // pred_region
        _
      $region36: #{neulf_forward.1} parent=11 // pred_fallthru
        _
    $region12: #{neulf_forward.1} parent=5 // pred_fallthru
      _
    %p224 = scmp.lt.s32.totalorder %s13, 8
    // Predicated region
    $region37: #{neulf_forward.1} parent=5 // pred_check
      %p225 = pneg %p224
    $region38: #{neulf_forward.1} parent=5 // pred_check_branch
      %227 = sbr.rel (%p225) target = $region40
    $region39: #{neulf_forward.1} parent=5 // pred_region
      // Predicated region
      $region41: #{neulf_forward.1} parent=39 // pred_check
        %p228 = pneg %p33
      $region42: #{neulf_forward.1} parent=39 // pred_check_branch
        %230 = sbr.rel (%p228) target = $region44
      $region43: #{neulf_forward.1} parent=39 // pred_region
        %s231 = smul.u32 8, %s13
        %p232 = scmp.lt.s32.totalorder %s231, 63
        %s233 = scalar_select %p232, %s231, 63
        %s234 = smul.addr %s233, 4
        %s235 = scalar_lea.vmem %s0, %s234
        %s236 = smul.u32 8, %s13
      $region44: #{neulf_forward.1} parent=39 // pred_fallthru
        _
    $region40: #{neulf_forward.1} parent=5 // pred_fallthru
      _
    %p237 = scmp.le.s32.totalorder 1, %s13
    %p238 = scmp.lt.s32.totalorder %s13, 9
    %p239 = pnand %p237, %p238
    %p240 = pneg %p239
    // Predicated region
    $region45: #{neulf_forward.1} parent=5 // pred_check
      _
    $region46: #{neulf_forward.1} parent=5 // pred_check_branch
      %242 = sbr.rel (%p239) target = $region48
    $region47: #{neulf_forward.1} parent=5 // pred_region
      %s243 = ssub.s32 %s13, 1
      %s244 = smul.u32 8, %s18
      %p245 = scmp.lt.s32.totalorder %s244, 63
      %s246 = scalar_select %p245, %s244, 63
      %s247 = smul.addr %s246, 4
      %s248 = scalar_lea.vmem %s0, %s247
      %p249 = pneg %p39
      %p250 = pneg %p36
      %p251 = pneg %p60
      %p252 = pneg %p57
      %p253 = pneg %p81
      %p254 = pneg %p78
      %p255 = pneg %p102
      %p256 = pneg %p99
      %p257 = pneg %p123
      %p258 = pneg %p120
      %p259 = pneg %p144
      %p260 = pneg %p141
      %p261 = pneg %p165
      %p262 = pneg %p162
      %p263 = pneg %p191
      %p264 = pneg %p188
      %s265 = smul.u32 8, %s18
      %p266 = scmp.lt.s32.totalorder %s265, 63
      %s267 = scalar_select %p266, %s265, 63
      %s268 = smul.addr %s267, 8
      %s269 = scalar_lea.vmem %s7, %s268
      %s270 = smul.u32 8, %s18
      %p271 = scmp.lt.s32.totalorder %s270, 63
      %s272 = scalar_select %p271, %s270, 63
      %s273 = smul.addr %s272, 4
      %s274 = scalar_lea.vmem %s0, %s273
      %s275 = smul.u32 8, %s18
      %s276 = smul.u32 8, %s18
      %p277 = scmp.lt.s32.totalorder %s276, 63
      %s278 = scalar_select %p277, %s276, 63
      %s279 = smul.addr %s278, 8
      %s280 = scalar_lea.vmem %s7, %s279
      %s281 = smul.u32 8, %s18
      %v283 = vld [vmem:[%s274] sm:$0xff]
      %v284 = vld [vmem:[%s274 + $0x8] sm:$0xff]
      %v285 = vld [vmem:[%s274 + $0x10] sm:$0xff]
      %v286 = vld [vmem:[%s274 + $0x18] sm:$0xff]
      %v287 = vld [vmem:[%s2] sm:$0xff]
      %v288 = vld [vmem:[%s2 + $0x8] sm:$0xff]
      %v289 = vld [vmem:[%s2 + $0x10] sm:$0xff]
      %v290 = vld [vmem:[%s2 + $0x18] sm:$0xff]
      %v291 = vld [vmem:[%s2 + $0x20] sm:$0xff]
      %v292 = vld [vmem:[%s2 + $0x28] sm:$0xff]
      %v293 = vld [vmem:[%s2 + $0x30] sm:$0xff]
      %v294 = vld [vmem:[%s2 + $0x38] sm:$0xff]
      %v295 = vld [vmem:[%s1] sm:$0xff]
      %v296 = vld [vmem:[%s1 + $0x8] sm:$0xff]
      %v297 = vld [vmem:[%s1 + $0x10] sm:$0xff]
      %v298 = vld [vmem:[%s1 + $0x18] sm:$0xff]
      %v299 = vld [vmem:[%s1 + $0x20] sm:$0xff]
      %v300 = vld [vmem:[%s1 + $0x28] sm:$0xff]
      %v301 = vld [vmem:[%s1 + $0x30] sm:$0xff]
      %v302 = vld [vmem:[%s1 + $0x38] sm:$0xff]
      %304 = vset.pattern.permute.xlu0 0
      %305 = vperm.xlu0 %304, %v295
      %v306 = vpop.permute.xlu0 %305
      %309 = vset.pattern.permute.xlu0 0
      %310 = vperm.xlu0 %309, %v296
      %v311 = vpop.permute.xlu0 %310
      %314 = vset.pattern.permute.xlu0 0
      %315 = vperm.xlu0 %314, %v297
      %v316 = vpop.permute.xlu0 %315
      %319 = vset.pattern.permute.xlu0 0
      %320 = vperm.xlu0 %319, %v298
      %v321 = vpop.permute.xlu0 %320
      %324 = vset.pattern.permute.xlu0 0
      %325 = vperm.xlu0 %324, %v299
      %v326 = vpop.permute.xlu0 %325
      %329 = vset.pattern.permute.xlu0 0
      %330 = vperm.xlu0 %329, %v300
      %v331 = vpop.permute.xlu0 %330
      %334 = vset.pattern.permute.xlu0 0
      %335 = vperm.xlu0 %334, %v301
      %v336 = vpop.permute.xlu0 %335
      %339 = vset.pattern.permute.xlu0 0
      %340 = vperm.xlu0 %339, %v302
      %v341 = vpop.permute.xlu0 %340
      %v347 = vlaneseq
      %v348 = vshrl.u32 %v347, 7
      %v349 = vsub.s32 0, %v348
      %v350 = vrot.slane %v283, %v349
      %v351 = vlaneseq
      %v352 = vshrl.u32 %v351, 7
      %v353 = vsub.s32 4, %v352
      %v354 = vrot.slane %v283, %v353
      %v355 = vlaneseq
      %v356 = vshrl.u32 %v355, 7
      %v357 = vsub.s32 0, %v356
      %v358 = vrot.slane %v284, %v357
      %v359 = vlaneseq
      %v360 = vshrl.u32 %v359, 7
      %v361 = vsub.s32 4, %v360
      %v362 = vrot.slane %v284, %v361
      %v363 = vlaneseq
      %v364 = vshrl.u32 %v363, 7
      %v365 = vsub.s32 0, %v364
      %v366 = vrot.slane %v285, %v365
      %v367 = vlaneseq
      %v368 = vshrl.u32 %v367, 7
      %v369 = vsub.s32 4, %v368
      %v370 = vrot.slane %v285, %v369
      %v371 = vlaneseq
      %v372 = vshrl.u32 %v371, 7
      %v373 = vsub.s32 0, %v372
      %v374 = vrot.slane %v286, %v373
      %v375 = vlaneseq
      %v376 = vshrl.u32 %v375, 7
      %v377 = vsub.s32 4, %v376
      %v378 = vrot.slane %v286, %v377
      %v387 = vlaneseq
      %v388 = vshrl.u32 %v387, 7
      %v389 = vsub.s32 0, %v388
      %v390 = vrot.slane %v350, %v389
      %v391 = vlaneseq
      %v392 = vshrl.u32 %v391, 7
      %v393 = vsub.s32 0, %v392
      %v394 = vrot.slane %v354, %v393
      %v395 = vlaneseq
      %v396 = vshrl.u32 %v395, 7
      %v397 = vsub.s32 0, %v396
      %v398 = vrot.slane %v358, %v397
      %v399 = vlaneseq
      %v400 = vshrl.u32 %v399, 7
      %v401 = vsub.s32 0, %v400
      %v402 = vrot.slane %v362, %v401
      %v403 = vlaneseq
      %v404 = vshrl.u32 %v403, 7
      %v405 = vsub.s32 0, %v404
      %v406 = vrot.slane %v366, %v405
      %v407 = vlaneseq
      %v408 = vshrl.u32 %v407, 7
      %v409 = vsub.s32 0, %v408
      %v410 = vrot.slane %v370, %v409
      %v411 = vlaneseq
      %v412 = vshrl.u32 %v411, 7
      %v413 = vsub.s32 0, %v412
      %v414 = vrot.slane %v374, %v413
      %v415 = vlaneseq
      %v416 = vshrl.u32 %v415, 7
      %v417 = vsub.s32 0, %v416
      %v418 = vrot.slane %v378, %v417
      %v419 = vmul.f32 %v306, %v390
      %v420 = vmul.f32 %v306, %v394
      %v421 = vmul.f32 %v306, %v398
      %v422 = vmul.f32 %v306, %v402
      %v423 = vmul.f32 %v306, %v406
      %v424 = vmul.f32 %v306, %v410
      %v425 = vmul.f32 %v306, %v414
      %v426 = vmul.f32 %v306, %v418
      %v427 = vmul.f32 %v311, %v390
      %v428 = vmul.f32 %v311, %v394
      %v429 = vmul.f32 %v311, %v398
      %v430 = vmul.f32 %v311, %v402
      %v431 = vmul.f32 %v311, %v406
      %v432 = vmul.f32 %v311, %v410
      %v433 = vmul.f32 %v311, %v414
      %v434 = vmul.f32 %v311, %v418
      %v435 = vmul.f32 %v316, %v390
      %v436 = vmul.f32 %v316, %v394
      %v437 = vmul.f32 %v316, %v398
      %v438 = vmul.f32 %v316, %v402
      %v439 = vmul.f32 %v316, %v406
      %v440 = vmul.f32 %v316, %v410
      %v441 = vmul.f32 %v316, %v414
      %v442 = vmul.f32 %v316, %v418
      %v443 = vmul.f32 %v321, %v390
      %v444 = vmul.f32 %v321, %v394
      %v445 = vmul.f32 %v321, %v398
      %v446 = vmul.f32 %v321, %v402
      %v447 = vmul.f32 %v321, %v406
      %v448 = vmul.f32 %v321, %v410
      %v449 = vmul.f32 %v321, %v414
      %v450 = vmul.f32 %v321, %v418
      %v451 = vmul.f32 %v326, %v390
      %v452 = vmul.f32 %v326, %v394
      %v453 = vmul.f32 %v326, %v398
      %v454 = vmul.f32 %v326, %v402
      %v455 = vmul.f32 %v326, %v406
      %v456 = vmul.f32 %v326, %v410
      %v457 = vmul.f32 %v326, %v414
      %v458 = vmul.f32 %v326, %v418
      %v459 = vmul.f32 %v331, %v390
      %v460 = vmul.f32 %v331, %v394
      %v461 = vmul.f32 %v331, %v398
      %v462 = vmul.f32 %v331, %v402
      %v463 = vmul.f32 %v331, %v406
      %v464 = vmul.f32 %v331, %v410
      %v465 = vmul.f32 %v331, %v414
      %v466 = vmul.f32 %v331, %v418
      %v467 = vmul.f32 %v336, %v390
      %v468 = vmul.f32 %v336, %v394
      %v469 = vmul.f32 %v336, %v398
      %v470 = vmul.f32 %v336, %v402
      %v471 = vmul.f32 %v336, %v406
      %v472 = vmul.f32 %v336, %v410
      %v473 = vmul.f32 %v336, %v414
      %v474 = vmul.f32 %v336, %v418
      %v475 = vmul.f32 %v341, %v390
      %v476 = vmul.f32 %v341, %v394
      %v477 = vmul.f32 %v341, %v398
      %v478 = vmul.f32 %v341, %v402
      %v479 = vmul.f32 %v341, %v406
      %v480 = vmul.f32 %v341, %v410
      %v481 = vmul.f32 %v341, %v414
      %v482 = vmul.f32 %v341, %v418
      %484 = vset.pattern.permute.xlu0 0
      %485 = vperm.xlu0 %484, %v287
      %v486 = vpop.permute.xlu0 %485
      %489 = vset.pattern.permute.xlu0 0
      %490 = vperm.xlu0 %489, %v288
      %v491 = vpop.permute.xlu0 %490
      %494 = vset.pattern.permute.xlu0 0
      %495 = vperm.xlu0 %494, %v289
      %v496 = vpop.permute.xlu0 %495
      %499 = vset.pattern.permute.xlu0 0
      %500 = vperm.xlu0 %499, %v290
      %v501 = vpop.permute.xlu0 %500
      %504 = vset.pattern.permute.xlu0 0
      %505 = vperm.xlu0 %504, %v291
      %v506 = vpop.permute.xlu0 %505
      %509 = vset.pattern.permute.xlu0 0
      %510 = vperm.xlu0 %509, %v292
      %v511 = vpop.permute.xlu0 %510
      %514 = vset.pattern.permute.xlu0 0
      %515 = vperm.xlu0 %514, %v293
      %v516 = vpop.permute.xlu0 %515
      %519 = vset.pattern.permute.xlu0 0
      %520 = vperm.xlu0 %519, %v294
      %v521 = vpop.permute.xlu0 %520
      %v523 = vadd.f32 %v486, %v419
      %v524 = vadd.f32 %v486, %v420
      %v525 = vadd.f32 %v486, %v421
      %v526 = vadd.f32 %v486, %v422
      %v527 = vadd.f32 %v486, %v423
      %v528 = vadd.f32 %v486, %v424
      %v529 = vadd.f32 %v486, %v425
      %v530 = vadd.f32 %v486, %v426
      %v531 = vadd.f32 %v491, %v427
      %v532 = vadd.f32 %v491, %v428
      %v533 = vadd.f32 %v491, %v429
      %v534 = vadd.f32 %v491, %v430
      %v535 = vadd.f32 %v491, %v431
      %v536 = vadd.f32 %v491, %v432
      %v537 = vadd.f32 %v491, %v433
      %v538 = vadd.f32 %v491, %v434
      %v539 = vadd.f32 %v496, %v435
      %v540 = vadd.f32 %v496, %v436
      %v541 = vadd.f32 %v496, %v437
      %v542 = vadd.f32 %v496, %v438
      %v543 = vadd.f32 %v496, %v439
      %v544 = vadd.f32 %v496, %v440
      %v545 = vadd.f32 %v496, %v441
      %v546 = vadd.f32 %v496, %v442
      %v547 = vadd.f32 %v501, %v443
      %v548 = vadd.f32 %v501, %v444
      %v549 = vadd.f32 %v501, %v445
      %v550 = vadd.f32 %v501, %v446
      %v551 = vadd.f32 %v501, %v447
      %v552 = vadd.f32 %v501, %v448
      %v553 = vadd.f32 %v501, %v449
      %v554 = vadd.f32 %v501, %v450
      %v555 = vadd.f32 %v506, %v451
      %v556 = vadd.f32 %v506, %v452
      %v557 = vadd.f32 %v506, %v453
      %v558 = vadd.f32 %v506, %v454
      %v559 = vadd.f32 %v506, %v455
      %v560 = vadd.f32 %v506, %v456
      %v561 = vadd.f32 %v506, %v457
      %v562 = vadd.f32 %v506, %v458
      %v563 = vadd.f32 %v511, %v459
      %v564 = vadd.f32 %v511, %v460
      %v565 = vadd.f32 %v511, %v461
      %v566 = vadd.f32 %v511, %v462
      %v567 = vadd.f32 %v511, %v463
      %v568 = vadd.f32 %v511, %v464
      %v569 = vadd.f32 %v511, %v465
      %v570 = vadd.f32 %v511, %v466
      %v571 = vadd.f32 %v516, %v467
      %v572 = vadd.f32 %v516, %v468
      %v573 = vadd.f32 %v516, %v469
      %v574 = vadd.f32 %v516, %v470
      %v575 = vadd.f32 %v516, %v471
      %v576 = vadd.f32 %v516, %v472
      %v577 = vadd.f32 %v516, %v473
      %v578 = vadd.f32 %v516, %v474
      %v579 = vadd.f32 %v521, %v475
      %v580 = vadd.f32 %v521, %v476
      %v581 = vadd.f32 %v521, %v477
      %v582 = vadd.f32 %v521, %v478
      %v583 = vadd.f32 %v521, %v479
      %v584 = vadd.f32 %v521, %v480
      %v585 = vadd.f32 %v521, %v481
      %v586 = vadd.f32 %v521, %v482
      %587 = vset.pattern.permute.xlu0 1
      %588 = vperm.xlu0 %587, %v295
      %v589 = vpop.permute.xlu0 %588
      %591 = vset.pattern.permute.xlu0 1
      %592 = vperm.xlu0 %591, %v296
      %v593 = vpop.permute.xlu0 %592
      %595 = vset.pattern.permute.xlu0 1
      %596 = vperm.xlu0 %595, %v297
      %v597 = vpop.permute.xlu0 %596
      %599 = vset.pattern.permute.xlu0 1
      %600 = vperm.xlu0 %599, %v298
      %v601 = vpop.permute.xlu0 %600
      %603 = vset.pattern.permute.xlu0 1
      %604 = vperm.xlu0 %603, %v299
      %v605 = vpop.permute.xlu0 %604
      %607 = vset.pattern.permute.xlu0 1
      %608 = vperm.xlu0 %607, %v300
      %v609 = vpop.permute.xlu0 %608
      %611 = vset.pattern.permute.xlu0 1
      %612 = vperm.xlu0 %611, %v301
      %v613 = vpop.permute.xlu0 %612
      %615 = vset.pattern.permute.xlu0 1
      %616 = vperm.xlu0 %615, %v302
      %v617 = vpop.permute.xlu0 %616
      %v619 = vlaneseq
      %v620 = vshrl.u32 %v619, 7
      %v621 = vsub.s32 1, %v620
      %v622 = vrot.slane %v283, %v621
      %v623 = vlaneseq
      %v624 = vshrl.u32 %v623, 7
      %v625 = vsub.s32 5, %v624
      %v626 = vrot.slane %v283, %v625
      %v627 = vlaneseq
      %v628 = vshrl.u32 %v627, 7
      %v629 = vsub.s32 1, %v628
      %v630 = vrot.slane %v284, %v629
      %v631 = vlaneseq
      %v632 = vshrl.u32 %v631, 7
      %v633 = vsub.s32 5, %v632
      %v634 = vrot.slane %v284, %v633
      %v635 = vlaneseq
      %v636 = vshrl.u32 %v635, 7
      %v637 = vsub.s32 1, %v636
      %v638 = vrot.slane %v285, %v637
      %v639 = vlaneseq
      %v640 = vshrl.u32 %v639, 7
      %v641 = vsub.s32 5, %v640
      %v642 = vrot.slane %v285, %v641
      %v643 = vlaneseq
      %v644 = vshrl.u32 %v643, 7
      %v645 = vsub.s32 1, %v644
      %v646 = vrot.slane %v286, %v645
      %v647 = vlaneseq
      %v648 = vshrl.u32 %v647, 7
      %v649 = vsub.s32 5, %v648
      %v650 = vrot.slane %v286, %v649
      %v659 = vlaneseq
      %v660 = vshrl.u32 %v659, 7
      %v661 = vsub.s32 1, %v660
      %v662 = vrot.slane %v622, %v661
      %v663 = vlaneseq
      %v664 = vshrl.u32 %v663, 7
      %v665 = vsub.s32 1, %v664
      %v666 = vrot.slane %v626, %v665
      %v667 = vlaneseq
      %v668 = vshrl.u32 %v667, 7
      %v669 = vsub.s32 1, %v668
      %v670 = vrot.slane %v630, %v669
      %v671 = vlaneseq
      %v672 = vshrl.u32 %v671, 7
      %v673 = vsub.s32 1, %v672
      %v674 = vrot.slane %v634, %v673
      %v675 = vlaneseq
      %v676 = vshrl.u32 %v675, 7
      %v677 = vsub.s32 1, %v676
      %v678 = vrot.slane %v638, %v677
      %v679 = vlaneseq
      %v680 = vshrl.u32 %v679, 7
      %v681 = vsub.s32 1, %v680
      %v682 = vrot.slane %v642, %v681
      %v683 = vlaneseq
      %v684 = vshrl.u32 %v683, 7
      %v685 = vsub.s32 1, %v684
      %v686 = vrot.slane %v646, %v685
      %v687 = vlaneseq
      %v688 = vshrl.u32 %v687, 7
      %v689 = vsub.s32 1, %v688
      %v690 = vrot.slane %v650, %v689
      %v691 = vmul.f32 %v589, %v662
      %v692 = vmul.f32 %v589, %v666
      %v693 = vmul.f32 %v589, %v670
      %v694 = vmul.f32 %v589, %v674
      %v695 = vmul.f32 %v589, %v678
      %v696 = vmul.f32 %v589, %v682
      %v697 = vmul.f32 %v589, %v686
      %v698 = vmul.f32 %v589, %v690
      %v699 = vmul.f32 %v593, %v662
      %v700 = vmul.f32 %v593, %v666
      %v701 = vmul.f32 %v593, %v670
      %v702 = vmul.f32 %v593, %v674
      %v703 = vmul.f32 %v593, %v678
      %v704 = vmul.f32 %v593, %v682
      %v705 = vmul.f32 %v593, %v686
      %v706 = vmul.f32 %v593, %v690
      %v707 = vmul.f32 %v597, %v662
      %v708 = vmul.f32 %v597, %v666
      %v709 = vmul.f32 %v597, %v670
      %v710 = vmul.f32 %v597, %v674
      %v711 = vmul.f32 %v597, %v678
      %v712 = vmul.f32 %v597, %v682
      %v713 = vmul.f32 %v597, %v686
      %v714 = vmul.f32 %v597, %v690
      %v715 = vmul.f32 %v601, %v662
      %v716 = vmul.f32 %v601, %v666
      %v717 = vmul.f32 %v601, %v670
      %v718 = vmul.f32 %v601, %v674
      %v719 = vmul.f32 %v601, %v678
      %v720 = vmul.f32 %v601, %v682
      %v721 = vmul.f32 %v601, %v686
      %v722 = vmul.f32 %v601, %v690
      %v723 = vmul.f32 %v605, %v662
      %v724 = vmul.f32 %v605, %v666
      %v725 = vmul.f32 %v605, %v670
      %v726 = vmul.f32 %v605, %v674
      %v727 = vmul.f32 %v605, %v678
      %v728 = vmul.f32 %v605, %v682
      %v729 = vmul.f32 %v605, %v686
      %v730 = vmul.f32 %v605, %v690
      %v731 = vmul.f32 %v609, %v662
      %v732 = vmul.f32 %v609, %v666
      %v733 = vmul.f32 %v609, %v670
      %v734 = vmul.f32 %v609, %v674
      %v735 = vmul.f32 %v609, %v678
      %v736 = vmul.f32 %v609, %v682
      %v737 = vmul.f32 %v609, %v686
      %v738 = vmul.f32 %v609, %v690
      %v739 = vmul.f32 %v613, %v662
      %v740 = vmul.f32 %v613, %v666
      %v741 = vmul.f32 %v613, %v670
      %v742 = vmul.f32 %v613, %v674
      %v743 = vmul.f32 %v613, %v678
      %v744 = vmul.f32 %v613, %v682
      %v745 = vmul.f32 %v613, %v686
      %v746 = vmul.f32 %v613, %v690
      %v747 = vmul.f32 %v617, %v662
      %v748 = vmul.f32 %v617, %v666
      %v749 = vmul.f32 %v617, %v670
      %v750 = vmul.f32 %v617, %v674
      %v751 = vmul.f32 %v617, %v678
      %v752 = vmul.f32 %v617, %v682
      %v753 = vmul.f32 %v617, %v686
      %v754 = vmul.f32 %v617, %v690
      %v755 = vadd.f32 %v523, %v691
      %v756 = vadd.f32 %v524, %v692
      %v757 = vadd.f32 %v525, %v693
      %v758 = vadd.f32 %v526, %v694
      %v759 = vadd.f32 %v527, %v695
      %v760 = vadd.f32 %v528, %v696
      %v761 = vadd.f32 %v529, %v697
      %v762 = vadd.f32 %v530, %v698
      %v763 = vadd.f32 %v531, %v699
      %v764 = vadd.f32 %v532, %v700
      %v765 = vadd.f32 %v533, %v701
      %v766 = vadd.f32 %v534, %v702
      %v767 = vadd.f32 %v535, %v703
      %v768 = vadd.f32 %v536, %v704
      %v769 = vadd.f32 %v537, %v705
      %v770 = vadd.f32 %v538, %v706
      %v771 = vadd.f32 %v539, %v707
      %v772 = vadd.f32 %v540, %v708
      %v773 = vadd.f32 %v541, %v709
      %v774 = vadd.f32 %v542, %v710
      %v775 = vadd.f32 %v543, %v711
      %v776 = vadd.f32 %v544, %v712
      %v777 = vadd.f32 %v545, %v713
      %v778 = vadd.f32 %v546, %v714
      %v779 = vadd.f32 %v547, %v715
      %v780 = vadd.f32 %v548, %v716
      %v781 = vadd.f32 %v549, %v717
      %v782 = vadd.f32 %v550, %v718
      %v783 = vadd.f32 %v551, %v719
      %v784 = vadd.f32 %v552, %v720
      %v785 = vadd.f32 %v553, %v721
      %v786 = vadd.f32 %v554, %v722
      %v787 = vadd.f32 %v555, %v723
      %v788 = vadd.f32 %v556, %v724
      %v789 = vadd.f32 %v557, %v725
      %v790 = vadd.f32 %v558, %v726
      %v791 = vadd.f32 %v559, %v727
      %v792 = vadd.f32 %v560, %v728
      %v793 = vadd.f32 %v561, %v729
      %v794 = vadd.f32 %v562, %v730
      %v795 = vadd.f32 %v563, %v731
      %v796 = vadd.f32 %v564, %v732
      %v797 = vadd.f32 %v565, %v733
      %v798 = vadd.f32 %v566, %v734
      %v799 = vadd.f32 %v567, %v735
      %v800 = vadd.f32 %v568, %v736
      %v801 = vadd.f32 %v569, %v737
      %v802 = vadd.f32 %v570, %v738
      %v803 = vadd.f32 %v571, %v739
      %v804 = vadd.f32 %v572, %v740
      %v805 = vadd.f32 %v573, %v741
      %v806 = vadd.f32 %v574, %v742
      %v807 = vadd.f32 %v575, %v743
      %v808 = vadd.f32 %v576, %v744
      %v809 = vadd.f32 %v577, %v745
      %v810 = vadd.f32 %v578, %v746
      %v811 = vadd.f32 %v579, %v747
      %v812 = vadd.f32 %v580, %v748
      %v813 = vadd.f32 %v581, %v749
      %v814 = vadd.f32 %v582, %v750
      %v815 = vadd.f32 %v583, %v751
      %v816 = vadd.f32 %v584, %v752
      %v817 = vadd.f32 %v585, %v753
      %v818 = vadd.f32 %v586, %v754
      %819 = vset.pattern.permute.xlu0 2
      %820 = vperm.xlu0 %819, %v295
      %v821 = vpop.permute.xlu0 %820
      %823 = vset.pattern.permute.xlu0 2
      %824 = vperm.xlu0 %823, %v296
      %v825 = vpop.permute.xlu0 %824
      %827 = vset.pattern.permute.xlu0 2
      %828 = vperm.xlu0 %827, %v297
      %v829 = vpop.permute.xlu0 %828
      %831 = vset.pattern.permute.xlu0 2
      %832 = vperm.xlu0 %831, %v298
      %v833 = vpop.permute.xlu0 %832
      %835 = vset.pattern.permute.xlu0 2
      %836 = vperm.xlu0 %835, %v299
      %v837 = vpop.permute.xlu0 %836
      %839 = vset.pattern.permute.xlu0 2
      %840 = vperm.xlu0 %839, %v300
      %v841 = vpop.permute.xlu0 %840
      %843 = vset.pattern.permute.xlu0 2
      %844 = vperm.xlu0 %843, %v301
      %v845 = vpop.permute.xlu0 %844
      %847 = vset.pattern.permute.xlu0 2
      %848 = vperm.xlu0 %847, %v302
      %v849 = vpop.permute.xlu0 %848
      %v851 = vlaneseq
      %v852 = vshrl.u32 %v851, 7
      %v853 = vsub.s32 2, %v852
      %v854 = vrot.slane %v283, %v853
      %v855 = vlaneseq
      %v856 = vshrl.u32 %v855, 7
      %v857 = vsub.s32 6, %v856
      %v858 = vrot.slane %v283, %v857
      %v859 = vlaneseq
      %v860 = vshrl.u32 %v859, 7
      %v861 = vsub.s32 2, %v860
      %v862 = vrot.slane %v284, %v861
      %v863 = vlaneseq
      %v864 = vshrl.u32 %v863, 7
      %v865 = vsub.s32 6, %v864
      %v866 = vrot.slane %v284, %v865
      %v867 = vlaneseq
      %v868 = vshrl.u32 %v867, 7
      %v869 = vsub.s32 2, %v868
      %v870 = vrot.slane %v285, %v869
      %v871 = vlaneseq
      %v872 = vshrl.u32 %v871, 7
      %v873 = vsub.s32 6, %v872
      %v874 = vrot.slane %v285, %v873
      %v875 = vlaneseq
      %v876 = vshrl.u32 %v875, 7
      %v877 = vsub.s32 2, %v876
      %v878 = vrot.slane %v286, %v877
      %v879 = vlaneseq
      %v880 = vshrl.u32 %v879, 7
      %v881 = vsub.s32 6, %v880
      %v882 = vrot.slane %v286, %v881
      %v891 = vlaneseq
      %v892 = vshrl.u32 %v891, 7
      %v893 = vsub.s32 2, %v892
      %v894 = vrot.slane %v854, %v893
      %v895 = vlaneseq
      %v896 = vshrl.u32 %v895, 7
      %v897 = vsub.s32 2, %v896
      %v898 = vrot.slane %v858, %v897
      %v899 = vlaneseq
      %v900 = vshrl.u32 %v899, 7
      %v901 = vsub.s32 2, %v900
      %v902 = vrot.slane %v862, %v901
      %v903 = vlaneseq
      %v904 = vshrl.u32 %v903, 7
      %v905 = vsub.s32 2, %v904
      %v906 = vrot.slane %v866, %v905
      %v907 = vlaneseq
      %v908 = vshrl.u32 %v907, 7
      %v909 = vsub.s32 2, %v908
      %v910 = vrot.slane %v870, %v909
      %v911 = vlaneseq
      %v912 = vshrl.u32 %v911, 7
      %v913 = vsub.s32 2, %v912
      %v914 = vrot.slane %v874, %v913
      %v915 = vlaneseq
      %v916 = vshrl.u32 %v915, 7
      %v917 = vsub.s32 2, %v916
      %v918 = vrot.slane %v878, %v917
      %v919 = vlaneseq
      %v920 = vshrl.u32 %v919, 7
      %v921 = vsub.s32 2, %v920
      %v922 = vrot.slane %v882, %v921
      %v923 = vmul.f32 %v821, %v894
      %v924 = vmul.f32 %v821, %v898
      %v925 = vmul.f32 %v821, %v902
      %v926 = vmul.f32 %v821, %v906
      %v927 = vmul.f32 %v821, %v910
      %v928 = vmul.f32 %v821, %v914
      %v929 = vmul.f32 %v821, %v918
      %v930 = vmul.f32 %v821, %v922
      %v931 = vmul.f32 %v825, %v894
      %v932 = vmul.f32 %v825, %v898
      %v933 = vmul.f32 %v825, %v902
      %v934 = vmul.f32 %v825, %v906
      %v935 = vmul.f32 %v825, %v910
      %v936 = vmul.f32 %v825, %v914
      %v937 = vmul.f32 %v825, %v918
      %v938 = vmul.f32 %v825, %v922
      %v939 = vmul.f32 %v829, %v894
      %v940 = vmul.f32 %v829, %v898
      %v941 = vmul.f32 %v829, %v902
      %v942 = vmul.f32 %v829, %v906
      %v943 = vmul.f32 %v829, %v910
      %v944 = vmul.f32 %v829, %v914
      %v945 = vmul.f32 %v829, %v918
      %v946 = vmul.f32 %v829, %v922
      %v947 = vmul.f32 %v833, %v894
      %v948 = vmul.f32 %v833, %v898
      %v949 = vmul.f32 %v833, %v902
      %v950 = vmul.f32 %v833, %v906
      %v951 = vmul.f32 %v833, %v910
      %v952 = vmul.f32 %v833, %v914
      %v953 = vmul.f32 %v833, %v918
      %v954 = vmul.f32 %v833, %v922
      %v955 = vmul.f32 %v837, %v894
      %v956 = vmul.f32 %v837, %v898
      %v957 = vmul.f32 %v837, %v902
      %v958 = vmul.f32 %v837, %v906
      %v959 = vmul.f32 %v837, %v910
      %v960 = vmul.f32 %v837, %v914
      %v961 = vmul.f32 %v837, %v918
      %v962 = vmul.f32 %v837, %v922
      %v963 = vmul.f32 %v841, %v894
      %v964 = vmul.f32 %v841, %v898
      %v965 = vmul.f32 %v841, %v902
      %v966 = vmul.f32 %v841, %v906
      %v967 = vmul.f32 %v841, %v910
      %v968 = vmul.f32 %v841, %v914
      %v969 = vmul.f32 %v841, %v918
      %v970 = vmul.f32 %v841, %v922
      %v971 = vmul.f32 %v845, %v894
      %v972 = vmul.f32 %v845, %v898
      %v973 = vmul.f32 %v845, %v902
      %v974 = vmul.f32 %v845, %v906
      %v975 = vmul.f32 %v845, %v910
      %v976 = vmul.f32 %v845, %v914
      %v977 = vmul.f32 %v845, %v918
      %v978 = vmul.f32 %v845, %v922
      %v979 = vmul.f32 %v849, %v894
      %v980 = vmul.f32 %v849, %v898
      %v981 = vmul.f32 %v849, %v902
      %v982 = vmul.f32 %v849, %v906
      %v983 = vmul.f32 %v849, %v910
      %v984 = vmul.f32 %v849, %v914
      %v985 = vmul.f32 %v849, %v918
      %v986 = vmul.f32 %v849, %v922
      %v987 = vadd.f32 %v755, %v923
      %v988 = vadd.f32 %v756, %v924
      %v989 = vadd.f32 %v757, %v925
      %v990 = vadd.f32 %v758, %v926
      %v991 = vadd.f32 %v759, %v927
      %v992 = vadd.f32 %v760, %v928
      %v993 = vadd.f32 %v761, %v929
      %v994 = vadd.f32 %v762, %v930
      %v995 = vadd.f32 %v763, %v931
      %v996 = vadd.f32 %v764, %v932
      %v997 = vadd.f32 %v765, %v933
      %v998 = vadd.f32 %v766, %v934
      %v999 = vadd.f32 %v767, %v935
      %v1000 = vadd.f32 %v768, %v936
      %v1001 = vadd.f32 %v769, %v937
      %v1002 = vadd.f32 %v770, %v938
      %v1003 = vadd.f32 %v771, %v939
      %v1004 = vadd.f32 %v772, %v940
      %v1005 = vadd.f32 %v773, %v941
      %v1006 = vadd.f32 %v774, %v942
      %v1007 = vadd.f32 %v775, %v943
      %v1008 = vadd.f32 %v776, %v944
      %v1009 = vadd.f32 %v777, %v945
      %v1010 = vadd.f32 %v778, %v946
      %v1011 = vadd.f32 %v779, %v947
      %v1012 = vadd.f32 %v780, %v948
      %v1013 = vadd.f32 %v781, %v949
      %v1014 = vadd.f32 %v782, %v950
      %v1015 = vadd.f32 %v783, %v951
      %v1016 = vadd.f32 %v784, %v952
      %v1017 = vadd.f32 %v785, %v953
      %v1018 = vadd.f32 %v786, %v954
      %v1019 = vadd.f32 %v787, %v955
      %v1020 = vadd.f32 %v788, %v956
      %v1021 = vadd.f32 %v789, %v957
      %v1022 = vadd.f32 %v790, %v958
      %v1023 = vadd.f32 %v791, %v959
      %v1024 = vadd.f32 %v792, %v960
      %v1025 = vadd.f32 %v793, %v961
      %v1026 = vadd.f32 %v794, %v962
      %v1027 = vadd.f32 %v795, %v963
      %v1028 = vadd.f32 %v796, %v964
      %v1029 = vadd.f32 %v797, %v965
      %v1030 = vadd.f32 %v798, %v966
      %v1031 = vadd.f32 %v799, %v967
      %v1032 = vadd.f32 %v800, %v968
      %v1033 = vadd.f32 %v801, %v969
      %v1034 = vadd.f32 %v802, %v970
      %v1035 = vadd.f32 %v803, %v971
      %v1036 = vadd.f32 %v804, %v972
      %v1037 = vadd.f32 %v805, %v973
      %v1038 = vadd.f32 %v806, %v974
      %v1039 = vadd.f32 %v807, %v975
      %v1040 = vadd.f32 %v808, %v976
      %v1041 = vadd.f32 %v809, %v977
      %v1042 = vadd.f32 %v810, %v978
      %v1043 = vadd.f32 %v811, %v979
      %v1044 = vadd.f32 %v812, %v980
      %v1045 = vadd.f32 %v813, %v981
      %v1046 = vadd.f32 %v814, %v982
      %v1047 = vadd.f32 %v815, %v983
      %v1048 = vadd.f32 %v816, %v984
      %v1049 = vadd.f32 %v817, %v985
      %v1050 = vadd.f32 %v818, %v986
      %1051 = vset.pattern.permute.xlu0 3
      %1052 = vperm.xlu0 %1051, %v295
      %v1053 = vpop.permute.xlu0 %1052
      %1055 = vset.pattern.permute.xlu0 3
      %1056 = vperm.xlu0 %1055, %v296
      %v1057 = vpop.permute.xlu0 %1056
      %1059 = vset.pattern.permute.xlu0 3
      %1060 = vperm.xlu0 %1059, %v297
      %v1061 = vpop.permute.xlu0 %1060
      %1063 = vset.pattern.permute.xlu0 3
      %1064 = vperm.xlu0 %1063, %v298
      %v1065 = vpop.permute.xlu0 %1064
      %1067 = vset.pattern.permute.xlu0 3
      %1068 = vperm.xlu0 %1067, %v299
      %v1069 = vpop.permute.xlu0 %1068
      %1071 = vset.pattern.permute.xlu0 3
      %1072 = vperm.xlu0 %1071, %v300
      %v1073 = vpop.permute.xlu0 %1072
      %1075 = vset.pattern.permute.xlu0 3
      %1076 = vperm.xlu0 %1075, %v301
      %v1077 = vpop.permute.xlu0 %1076
      %1079 = vset.pattern.permute.xlu0 3
      %1080 = vperm.xlu0 %1079, %v302
      %v1081 = vpop.permute.xlu0 %1080
      %v1083 = vlaneseq
      %v1084 = vshrl.u32 %v1083, 7
      %v1085 = vsub.s32 3, %v1084
      %v1086 = vrot.slane %v283, %v1085
      %v1087 = vlaneseq
      %v1088 = vshrl.u32 %v1087, 7
      %v1089 = vsub.s32 7, %v1088
      %v1090 = vrot.slane %v283, %v1089
      %v1091 = vlaneseq
      %v1092 = vshrl.u32 %v1091, 7
      %v1093 = vsub.s32 3, %v1092
      %v1094 = vrot.slane %v284, %v1093
      %v1095 = vlaneseq
      %v1096 = vshrl.u32 %v1095, 7
      %v1097 = vsub.s32 7, %v1096
      %v1098 = vrot.slane %v284, %v1097
      %v1099 = vlaneseq
      %v1100 = vshrl.u32 %v1099, 7
      %v1101 = vsub.s32 3, %v1100
      %v1102 = vrot.slane %v285, %v1101
      %v1103 = vlaneseq
      %v1104 = vshrl.u32 %v1103, 7
      %v1105 = vsub.s32 7, %v1104
      %v1106 = vrot.slane %v285, %v1105
      %v1107 = vlaneseq
      %v1108 = vshrl.u32 %v1107, 7
      %v1109 = vsub.s32 3, %v1108
      %v1110 = vrot.slane %v286, %v1109
      %v1111 = vlaneseq
      %v1112 = vshrl.u32 %v1111, 7
      %v1113 = vsub.s32 7, %v1112
      %v1114 = vrot.slane %v286, %v1113
      %v1123 = vlaneseq
      %v1124 = vshrl.u32 %v1123, 7
      %v1125 = vsub.s32 3, %v1124
      %v1126 = vrot.slane %v1086, %v1125
      %v1127 = vlaneseq
      %v1128 = vshrl.u32 %v1127, 7
      %v1129 = vsub.s32 3, %v1128
      %v1130 = vrot.slane %v1090, %v1129
      %v1131 = vlaneseq
      %v1132 = vshrl.u32 %v1131, 7
      %v1133 = vsub.s32 3, %v1132
      %v1134 = vrot.slane %v1094, %v1133
      %v1135 = vlaneseq
      %v1136 = vshrl.u32 %v1135, 7
      %v1137 = vsub.s32 3, %v1136
      %v1138 = vrot.slane %v1098, %v1137
      %v1139 = vlaneseq
      %v1140 = vshrl.u32 %v1139, 7
      %v1141 = vsub.s32 3, %v1140
      %v1142 = vrot.slane %v1102, %v1141
      %v1143 = vlaneseq
      %v1144 = vshrl.u32 %v1143, 7
      %v1145 = vsub.s32 3, %v1144
      %v1146 = vrot.slane %v1106, %v1145
      %v1147 = vlaneseq
      %v1148 = vshrl.u32 %v1147, 7
      %v1149 = vsub.s32 3, %v1148
      %v1150 = vrot.slane %v1110, %v1149
      %v1151 = vlaneseq
      %v1152 = vshrl.u32 %v1151, 7
      %v1153 = vsub.s32 3, %v1152
      %v1154 = vrot.slane %v1114, %v1153
      %v1155 = vmul.f32 %v1053, %v1126
      %v1156 = vmul.f32 %v1053, %v1130
      %v1157 = vmul.f32 %v1053, %v1134
      %v1158 = vmul.f32 %v1053, %v1138
      %v1159 = vmul.f32 %v1053, %v1142
      %v1160 = vmul.f32 %v1053, %v1146
      %v1161 = vmul.f32 %v1053, %v1150
      %v1162 = vmul.f32 %v1053, %v1154
      %v1163 = vmul.f32 %v1057, %v1126
      %v1164 = vmul.f32 %v1057, %v1130
      %v1165 = vmul.f32 %v1057, %v1134
      %v1166 = vmul.f32 %v1057, %v1138
      %v1167 = vmul.f32 %v1057, %v1142
      %v1168 = vmul.f32 %v1057, %v1146
      %v1169 = vmul.f32 %v1057, %v1150
      %v1170 = vmul.f32 %v1057, %v1154
      %v1171 = vmul.f32 %v1061, %v1126
      %v1172 = vmul.f32 %v1061, %v1130
      %v1173 = vmul.f32 %v1061, %v1134
      %v1174 = vmul.f32 %v1061, %v1138
      %v1175 = vmul.f32 %v1061, %v1142
      %v1176 = vmul.f32 %v1061, %v1146
      %v1177 = vmul.f32 %v1061, %v1150
      %v1178 = vmul.f32 %v1061, %v1154
      %v1179 = vmul.f32 %v1065, %v1126
      %v1180 = vmul.f32 %v1065, %v1130
      %v1181 = vmul.f32 %v1065, %v1134
      %v1182 = vmul.f32 %v1065, %v1138
      %v1183 = vmul.f32 %v1065, %v1142
      %v1184 = vmul.f32 %v1065, %v1146
      %v1185 = vmul.f32 %v1065, %v1150
      %v1186 = vmul.f32 %v1065, %v1154
      %v1187 = vmul.f32 %v1069, %v1126
      %v1188 = vmul.f32 %v1069, %v1130
      %v1189 = vmul.f32 %v1069, %v1134
      %v1190 = vmul.f32 %v1069, %v1138
      %v1191 = vmul.f32 %v1069, %v1142
      %v1192 = vmul.f32 %v1069, %v1146
      %v1193 = vmul.f32 %v1069, %v1150
      %v1194 = vmul.f32 %v1069, %v1154
      %v1195 = vmul.f32 %v1073, %v1126
      %v1196 = vmul.f32 %v1073, %v1130
      %v1197 = vmul.f32 %v1073, %v1134
      %v1198 = vmul.f32 %v1073, %v1138
      %v1199 = vmul.f32 %v1073, %v1142
      %v1200 = vmul.f32 %v1073, %v1146
      %v1201 = vmul.f32 %v1073, %v1150
      %v1202 = vmul.f32 %v1073, %v1154
      %v1203 = vmul.f32 %v1077, %v1126
      %v1204 = vmul.f32 %v1077, %v1130
      %v1205 = vmul.f32 %v1077, %v1134
      %v1206 = vmul.f32 %v1077, %v1138
      %v1207 = vmul.f32 %v1077, %v1142
      %v1208 = vmul.f32 %v1077, %v1146
      %v1209 = vmul.f32 %v1077, %v1150
      %v1210 = vmul.f32 %v1077, %v1154
      %v1211 = vmul.f32 %v1081, %v1126
      %v1212 = vmul.f32 %v1081, %v1130
      %v1213 = vmul.f32 %v1081, %v1134
      %v1214 = vmul.f32 %v1081, %v1138
      %v1215 = vmul.f32 %v1081, %v1142
      %v1216 = vmul.f32 %v1081, %v1146
      %v1217 = vmul.f32 %v1081, %v1150
      %v1218 = vmul.f32 %v1081, %v1154
      %v1219 = vadd.f32 %v987, %v1155
      %v1220 = vadd.f32 %v988, %v1156
      %v1221 = vadd.f32 %v989, %v1157
      %v1222 = vadd.f32 %v990, %v1158
      %v1223 = vadd.f32 %v991, %v1159
      %v1224 = vadd.f32 %v992, %v1160
      %v1225 = vadd.f32 %v993, %v1161
      %v1226 = vadd.f32 %v994, %v1162
      %v1227 = vadd.f32 %v995, %v1163
      %v1228 = vadd.f32 %v996, %v1164
      %v1229 = vadd.f32 %v997, %v1165
      %v1230 = vadd.f32 %v998, %v1166
      %v1231 = vadd.f32 %v999, %v1167
      %v1232 = vadd.f32 %v1000, %v1168
      %v1233 = vadd.f32 %v1001, %v1169
      %v1234 = vadd.f32 %v1002, %v1170
      %v1235 = vadd.f32 %v1003, %v1171
      %v1236 = vadd.f32 %v1004, %v1172
      %v1237 = vadd.f32 %v1005, %v1173
      %v1238 = vadd.f32 %v1006, %v1174
      %v1239 = vadd.f32 %v1007, %v1175
      %v1240 = vadd.f32 %v1008, %v1176
      %v1241 = vadd.f32 %v1009, %v1177
      %v1242 = vadd.f32 %v1010, %v1178
      %v1243 = vadd.f32 %v1011, %v1179
      %v1244 = vadd.f32 %v1012, %v1180
      %v1245 = vadd.f32 %v1013, %v1181
      %v1246 = vadd.f32 %v1014, %v1182
      %v1247 = vadd.f32 %v1015, %v1183
      %v1248 = vadd.f32 %v1016, %v1184
      %v1249 = vadd.f32 %v1017, %v1185
      %v1250 = vadd.f32 %v1018, %v1186
      %v1251 = vadd.f32 %v1019, %v1187
      %v1252 = vadd.f32 %v1020, %v1188
      %v1253 = vadd.f32 %v1021, %v1189
      %v1254 = vadd.f32 %v1022, %v1190
      %v1255 = vadd.f32 %v1023, %v1191
      %v1256 = vadd.f32 %v1024, %v1192
      %v1257 = vadd.f32 %v1025, %v1193
      %v1258 = vadd.f32 %v1026, %v1194
      %v1259 = vadd.f32 %v1027, %v1195
      %v1260 = vadd.f32 %v1028, %v1196
      %v1261 = vadd.f32 %v1029, %v1197
      %v1262 = vadd.f32 %v1030, %v1198
      %v1263 = vadd.f32 %v1031, %v1199
      %v1264 = vadd.f32 %v1032, %v1200
      %v1265 = vadd.f32 %v1033, %v1201
      %v1266 = vadd.f32 %v1034, %v1202
      %v1267 = vadd.f32 %v1035, %v1203
      %v1268 = vadd.f32 %v1036, %v1204
      %v1269 = vadd.f32 %v1037, %v1205
      %v1270 = vadd.f32 %v1038, %v1206
      %v1271 = vadd.f32 %v1039, %v1207
      %v1272 = vadd.f32 %v1040, %v1208
      %v1273 = vadd.f32 %v1041, %v1209
      %v1274 = vadd.f32 %v1042, %v1210
      %v1275 = vadd.f32 %v1043, %v1211
      %v1276 = vadd.f32 %v1044, %v1212
      %v1277 = vadd.f32 %v1045, %v1213
      %v1278 = vadd.f32 %v1046, %v1214
      %v1279 = vadd.f32 %v1047, %v1215
      %v1280 = vadd.f32 %v1048, %v1216
      %v1281 = vadd.f32 %v1049, %v1217
      %v1282 = vadd.f32 %v1050, %v1218
      %v1283 = vmax.f32 %v1219, 0.0
      %v1284 = vmax.f32 %v1220, 0.0
      %v1285 = vmax.f32 %v1221, 0.0
      %v1286 = vmax.f32 %v1222, 0.0
      %v1287 = vmax.f32 %v1223, 0.0
      %v1288 = vmax.f32 %v1224, 0.0
      %v1289 = vmax.f32 %v1225, 0.0
      %v1290 = vmax.f32 %v1226, 0.0
      %v1291 = vmax.f32 %v1227, 0.0
      %v1292 = vmax.f32 %v1228, 0.0
      %v1293 = vmax.f32 %v1229, 0.0
      %v1294 = vmax.f32 %v1230, 0.0
      %v1295 = vmax.f32 %v1231, 0.0
      %v1296 = vmax.f32 %v1232, 0.0
      %v1297 = vmax.f32 %v1233, 0.0
      %v1298 = vmax.f32 %v1234, 0.0
      %v1299 = vmax.f32 %v1235, 0.0
      %v1300 = vmax.f32 %v1236, 0.0
      %v1301 = vmax.f32 %v1237, 0.0
      %v1302 = vmax.f32 %v1238, 0.0
      %v1303 = vmax.f32 %v1239, 0.0
      %v1304 = vmax.f32 %v1240, 0.0
      %v1305 = vmax.f32 %v1241, 0.0
      %v1306 = vmax.f32 %v1242, 0.0
      %v1307 = vmax.f32 %v1243, 0.0
      %v1308 = vmax.f32 %v1244, 0.0
      %v1309 = vmax.f32 %v1245, 0.0
      %v1310 = vmax.f32 %v1246, 0.0
      %v1311 = vmax.f32 %v1247, 0.0
      %v1312 = vmax.f32 %v1248, 0.0
      %v1313 = vmax.f32 %v1249, 0.0
      %v1314 = vmax.f32 %v1250, 0.0
      %v1315 = vmax.f32 %v1251, 0.0
      %v1316 = vmax.f32 %v1252, 0.0
      %v1317 = vmax.f32 %v1253, 0.0
      %v1318 = vmax.f32 %v1254, 0.0
      %v1319 = vmax.f32 %v1255, 0.0
      %v1320 = vmax.f32 %v1256, 0.0
      %v1321 = vmax.f32 %v1257, 0.0
      %v1322 = vmax.f32 %v1258, 0.0
      %v1323 = vmax.f32 %v1259, 0.0
      %v1324 = vmax.f32 %v1260, 0.0
      %v1325 = vmax.f32 %v1261, 0.0
      %v1326 = vmax.f32 %v1262, 0.0
      %v1327 = vmax.f32 %v1263, 0.0
      %v1328 = vmax.f32 %v1264, 0.0
      %v1329 = vmax.f32 %v1265, 0.0
      %v1330 = vmax.f32 %v1266, 0.0
      %v1331 = vmax.f32 %v1267, 0.0
      %v1332 = vmax.f32 %v1268, 0.0
      %v1333 = vmax.f32 %v1269, 0.0
      %v1334 = vmax.f32 %v1270, 0.0
      %v1335 = vmax.f32 %v1271, 0.0
      %v1336 = vmax.f32 %v1272, 0.0
      %v1337 = vmax.f32 %v1273, 0.0
      %v1338 = vmax.f32 %v1274, 0.0
      %v1339 = vmax.f32 %v1275, 0.0
      %v1340 = vmax.f32 %v1276, 0.0
      %v1341 = vmax.f32 %v1277, 0.0
      %v1342 = vmax.f32 %v1278, 0.0
      %v1343 = vmax.f32 %v1279, 0.0
      %v1344 = vmax.f32 %v1280, 0.0
      %v1345 = vmax.f32 %v1281, 0.0
      %v1346 = vmax.f32 %v1282, 0.0
      %v1347 = vld [vmem:[%s3] sm:$0xf]
      %v1348 = vld [vmem:[%s3 + $0x4] sm:$0xf]
      %v1349 = vld [vmem:[%s3 + $0x8] sm:$0xf]
      %v1350 = vld [vmem:[%s3 + $0xc] sm:$0xf]
      %v1351 = vld [vmem:[%s3 + $0x10] sm:$0xf]
      %v1352 = vld [vmem:[%s3 + $0x14] sm:$0xf]
      %v1353 = vld [vmem:[%s3 + $0x18] sm:$0xf]
      %v1354 = vld [vmem:[%s3 + $0x1c] sm:$0xf]
      %v1355 = vpack.c.bf16 %v1291, %v1283
      %v1356 = vpack.c.bf16 %v1292, %v1284
      %v1357 = vpack.c.bf16 %v1293, %v1285
      %v1358 = vpack.c.bf16 %v1294, %v1286
      %v1359 = vpack.c.bf16 %v1295, %v1287
      %v1360 = vpack.c.bf16 %v1296, %v1288
      %v1361 = vpack.c.bf16 %v1297, %v1289
      %v1362 = vpack.c.bf16 %v1298, %v1290
      %v1363 = vpack.c.bf16 %v1307, %v1299
      %v1364 = vpack.c.bf16 %v1308, %v1300
      %v1365 = vpack.c.bf16 %v1309, %v1301
      %v1366 = vpack.c.bf16 %v1310, %v1302
      %v1367 = vpack.c.bf16 %v1311, %v1303
      %v1368 = vpack.c.bf16 %v1312, %v1304
      %v1369 = vpack.c.bf16 %v1313, %v1305
      %v1370 = vpack.c.bf16 %v1314, %v1306
      %v1371 = vpack.c.bf16 %v1323, %v1315
      %v1372 = vpack.c.bf16 %v1324, %v1316
      %v1373 = vpack.c.bf16 %v1325, %v1317
      %v1374 = vpack.c.bf16 %v1326, %v1318
      %v1375 = vpack.c.bf16 %v1327, %v1319
      %v1376 = vpack.c.bf16 %v1328, %v1320
      %v1377 = vpack.c.bf16 %v1329, %v1321
      %v1378 = vpack.c.bf16 %v1330, %v1322
      %v1379 = vpack.c.bf16 %v1339, %v1331
      %v1380 = vpack.c.bf16 %v1340, %v1332
      %v1381 = vpack.c.bf16 %v1341, %v1333
      %v1382 = vpack.c.bf16 %v1342, %v1334
      %v1383 = vpack.c.bf16 %v1343, %v1335
      %v1384 = vpack.c.bf16 %v1344, %v1336
      %v1385 = vpack.c.bf16 %v1345, %v1337
      %v1386 = vpack.c.bf16 %v1346, %v1338
      %v1387 = vld [vmem:[%s4] sm:$0xff]
      %v1388 = vld [vmem:[%s4 + $0x8] sm:$0xff]
      %v1389 = vld [vmem:[%s4 + $0x10] sm:$0xff]
      %v1390 = vld [vmem:[%s4 + $0x18] sm:$0xff]
      %v1391 = vld [vmem:[%s4 + $0x20] sm:$0xff]
      %v1392 = vld [vmem:[%s4 + $0x28] sm:$0xff]
      %v1393 = vld [vmem:[%s4 + $0x30] sm:$0xff]
      %v1394 = vld [vmem:[%s4 + $0x38] sm:$0xff]
      %1396 = vset.pattern.permute.xlu0 0
      %1397 = vperm.xlu0 %1396, %v1387
      %v1398 = vpop.permute.xlu0 %1397
      %1401 = vset.pattern.permute.xlu0 0
      %1402 = vperm.xlu0 %1401, %v1388
      %v1403 = vpop.permute.xlu0 %1402
      %1406 = vset.pattern.permute.xlu0 0
      %1407 = vperm.xlu0 %1406, %v1389
      %v1408 = vpop.permute.xlu0 %1407
      %1411 = vset.pattern.permute.xlu0 0
      %1412 = vperm.xlu0 %1411, %v1390
      %v1413 = vpop.permute.xlu0 %1412
      %1416 = vset.pattern.permute.xlu0 0
      %1417 = vperm.xlu0 %1416, %v1391
      %v1418 = vpop.permute.xlu0 %1417
      %1421 = vset.pattern.permute.xlu0 0
      %1422 = vperm.xlu0 %1421, %v1392
      %v1423 = vpop.permute.xlu0 %1422
      %1426 = vset.pattern.permute.xlu0 0
      %1427 = vperm.xlu0 %1426, %v1393
      %v1428 = vpop.permute.xlu0 %1427
      %1431 = vset.pattern.permute.xlu0 0
      %1432 = vperm.xlu0 %1431, %v1394
      %v1433 = vpop.permute.xlu0 %1432
      %v1443 = vunpack.c.l.b16 %v1347
      %v1444 = vunpack.c.l.b16 %v1348
      %v1445 = vunpack.c.l.b16 %v1349
      %v1446 = vunpack.c.l.b16 %v1350
      %v1447 = vunpack.c.l.b16 %v1351
      %v1448 = vunpack.c.l.b16 %v1352
      %v1449 = vunpack.c.l.b16 %v1353
      %v1450 = vunpack.c.l.b16 %v1354
      %v1451 = vpack.c.b16 %v1444, %v1443
      %v1452 = vpack.c.b16 %v1446, %v1445
      %v1453 = vpack.c.b16 %v1448, %v1447
      %v1454 = vpack.c.b16 %v1450, %v1449
      %vm1455 = vcmask 523264
      %v1457 = vsel %vm1455, %v1451, 0
      %v1460 = vsel %vm1455, %v1452, 0
      %v1463 = vsel %vm1455, %v1453, 0
      %v1466 = vsel %vm1455, %v1454, 0
      %1468 = vmatprep.subr.bf16.mxu0 %v1356
      %1469 = vmatpush1.bf16.msra.mxu0 %v1355
      %1470 = vmatprep.subr.bf16.mxu0 %v1364
      %1471 = vmatpush1.bf16.msra.mxu0 %v1363
      %1472 = vmatprep.subr.bf16.mxu0 %v1372
      %1473 = vmatpush1.bf16.msra.mxu0 %v1371
      %1474 = vmatprep.subr.bf16.mxu0 %v1380
      %1475 = vmatpush1.bf16.msra.mxu0 %v1379
      %1476 = vmatprep.subr.bf16.mxu0 0
      %1477 = vmatpush1.bf16.msra.mxu0 0
      %1478 = vmatprep.subr.bf16.mxu0 0
      %1479 = vmatpush1.bf16.msra.mxu0 0
      %1480 = vmatprep.subr.bf16.mxu0 0
      %1481 = vmatpush1.bf16.msra.mxu0 0
      %1482 = vmatprep.subr.bf16.mxu0 0
      %1483 = vmatpush1.bf16.msra.mxu0 0
      %1484 = vmatprep.subr.bf16.mxu0 0
      %1485 = vmatpush1.bf16.msra.mxu0 0
      %1486 = vmatprep.subr.bf16.mxu0 0
      %1487 = vmatpush1.bf16.msra.mxu0 0
      %1488 = vmatprep.subr.bf16.mxu0 0
      %1489 = vmatpush1.bf16.msra.mxu0 0
      %1490 = vmatprep.subr.bf16.mxu0 0
      %1491 = vmatpush1.bf16.msra.mxu0 0
      %1492 = vmatprep.subr.bf16.mxu0 0
      %1493 = vmatpush1.bf16.msra.mxu0 0
      %1494 = vmatprep.subr.bf16.mxu0 0
      %1495 = vmatpush1.bf16.msra.mxu0 0
      %1496 = vmatprep.subr.bf16.mxu0 0
      %1497 = vmatpush1.bf16.msra.mxu0 0
      %1498 = vmatprep.subr.bf16.mxu0 0
      %1499 = vmatpush1.bf16.msra.mxu0 0
      %1500 = vmatprep.mubr.bf16.mxu0 0
      %1501 = vmatmul.mubr.bf16.gmra.mrb[0].mxu0 %v1457
      %v1502 = vpop.f32.mrb[0].mxu0
      %v1503 = vadd.f32 %v1398, %v1502
      %v1504 = vpop.f32.mrb[0].mxu0
      %v1505 = vadd.f32 %v1398, %v1504
      %v1506 = vpop.f32.mrb[0].mxu0
      %v1507 = vadd.f32 %v1403, %v1506
      %v1508 = vpop.f32.mrb[0].mxu0
      %v1509 = vadd.f32 %v1403, %v1508
      %1510 = vmatprep.mubr.bf16.mxu0 0
      %1511 = vmatmul.mubr.bf16.gmra.mrb[0].mxu0 %v1460
      %v1512 = vpop.f32.mrb[0].mxu0
      %v1513 = vadd.f32 %v1408, %v1512
      %v1514 = vpop.f32.mrb[0].mxu0
      %v1515 = vadd.f32 %v1408, %v1514
      %v1516 = vpop.f32.mrb[0].mxu0
      %v1517 = vadd.f32 %v1413, %v1516
      %v1518 = vpop.f32.mrb[0].mxu0
      %v1519 = vadd.f32 %v1413, %v1518
      %1520 = vmatprep.mubr.bf16.mxu0 0
      %1521 = vmatmul.mubr.bf16.gmra.mrb[0].mxu0 %v1463
      %v1522 = vpop.f32.mrb[0].mxu0
      %v1523 = vadd.f32 %v1418, %v1522
      %v1524 = vpop.f32.mrb[0].mxu0
      %v1525 = vadd.f32 %v1418, %v1524
      %v1526 = vpop.f32.mrb[0].mxu0
      %v1527 = vadd.f32 %v1423, %v1526
      %v1528 = vpop.f32.mrb[0].mxu0
      %v1529 = vadd.f32 %v1423, %v1528
      %1530 = vmatprep.mubr.bf16.mxu0 0
      %1531 = vmatmul.mubr.bf16.gmra.mrb[0].mxu0 %v1466
      %v1532 = vpop.f32.mrb[0].mxu0
      %v1533 = vadd.f32 %v1428, %v1532
      %v1534 = vpop.f32.mrb[0].mxu0
      %v1535 = vadd.f32 %v1428, %v1534
      %v1536 = vpop.f32.mrb[0].mxu0
      %v1537 = vadd.f32 %v1433, %v1536
      %v1538 = vpop.f32.mrb[0].mxu0
      %v1539 = vadd.f32 %v1433, %v1538
      %1540 = vdwg.mxu0
      %1541 = vmatprep.subr.bf16.mxu0 %v1358
      %1542 = vmatpush1.bf16.msra.mxu0 %v1357
      %1543 = vmatprep.subr.bf16.mxu0 %v1366
      %1544 = vmatpush1.bf16.msra.mxu0 %v1365
      %1545 = vmatprep.subr.bf16.mxu0 %v1374
      %1546 = vmatpush1.bf16.msra.mxu0 %v1373
      %1547 = vmatprep.subr.bf16.mxu0 %v1382
      %1548 = vmatpush1.bf16.msra.mxu0 %v1381
      %1549 = vmatprep.subr.bf16.mxu0 0
      %1550 = vmatpush1.bf16.msra.mxu0 0
      %1551 = vmatprep.subr.bf16.mxu0 0
      %1552 = vmatpush1.bf16.msra.mxu0 0
      %1553 = vmatprep.subr.bf16.mxu0 0
      %1554 = vmatpush1.bf16.msra.mxu0 0
      %1555 = vmatprep.subr.bf16.mxu0 0
      %1556 = vmatpush1.bf16.msra.mxu0 0
      %1557 = vmatprep.subr.bf16.mxu0 0
      %1558 = vmatpush1.bf16.msra.mxu0 0
      %1559 = vmatprep.subr.bf16.mxu0 0
      %1560 = vmatpush1.bf16.msra.mxu0 0
      %1561 = vmatprep.subr.bf16.mxu0 0
      %1562 = vmatpush1.bf16.msra.mxu0 0
      %1563 = vmatprep.subr.bf16.mxu0 0
      %1564 = vmatpush1.bf16.msra.mxu0 0
      %1565 = vmatprep.subr.bf16.mxu0 0
      %1566 = vmatpush1.bf16.msra.mxu0 0
      %1567 = vmatprep.subr.bf16.mxu0 0
      %1568 = vmatpush1.bf16.msra.mxu0 0
      %1569 = vmatprep.subr.bf16.mxu0 0
      %1570 = vmatpush1.bf16.msra.mxu0 0
      %1571 = vmatprep.subr.bf16.mxu0 0
      %1572 = vmatpush1.bf16.msra.mxu0 0
      %1573 = vmatprep.mubr.bf16.mxu0 0
      %1574 = vmatmul.mubr.bf16.gmra.mrb[0].mxu0 %v1457
      %v1575 = vpop.f32.mrb[0].mxu0
      %v1576 = vadd.f32 %v1398, %v1575
      %v1577 = vpop.f32.mrb[0].mxu0
      %v1578 = vadd.f32 %v1398, %v1577
      %v1579 = vpop.f32.mrb[0].mxu0
      %v1580 = vadd.f32 %v1403, %v1579
      %v1581 = vpop.f32.mrb[0].mxu0
      %v1582 = vadd.f32 %v1403, %v1581
      %1583 = vmatprep.mubr.bf16.mxu0 0
      %1584 = vmatmul.mubr.bf16.gmra.mrb[0].mxu0 %v1460
      %v1585 = vpop.f32.mrb[0].mxu0
      %v1586 = vadd.f32 %v1408, %v1585
      %v1587 = vpop.f32.mrb[0].mxu0
      %v1588 = vadd.f32 %v1408, %v1587
      %v1589 = vpop.f32.mrb[0].mxu0
      %v1590 = vadd.f32 %v1413, %v1589
      %v1591 = vpop.f32.mrb[0].mxu0
      %v1592 = vadd.f32 %v1413, %v1591
      %1593 = vmatprep.mubr.bf16.mxu0 0
      %1594 = vmatmul.mubr.bf16.gmra.mrb[0].mxu0 %v1463
      %v1595 = vpop.f32.mrb[0].mxu0
      %v1596 = vadd.f32 %v1418, %v1595
      %v1597 = vpop.f32.mrb[0].mxu0
      %v1598 = vadd.f32 %v1418, %v1597
      %v1599 = vpop.f32.mrb[0].mxu0
      %v1600 = vadd.f32 %v1423, %v1599
      %v1601 = vpop.f32.mrb[0].mxu0
      %v1602 = vadd.f32 %v1423, %v1601
      %1603 = vmatprep.mubr.bf16.mxu0 0
      %1604 = vmatmul.mubr.bf16.gmra.mrb[0].mxu0 %v1466
      %v1605 = vpop.f32.mrb[0].mxu0
      %v1606 = vadd.f32 %v1428, %v1605
      %v1607 = vpop.f32.mrb[0].mxu0
      %v1608 = vadd.f32 %v1428, %v1607
      %v1609 = vpop.f32.mrb[0].mxu0
      %v1610 = vadd.f32 %v1433, %v1609
      %v1611 = vpop.f32.mrb[0].mxu0
      %v1612 = vadd.f32 %v1433, %v1611
      %1613 = vdwg.mxu0
      %1614 = vmatprep.subr.bf16.mxu0 %v1360
      %1615 = vmatpush1.bf16.msra.mxu0 %v1359
      %1616 = vmatprep.subr.bf16.mxu0 %v1368
      %1617 = vmatpush1.bf16.msra.mxu0 %v1367
      %1618 = vmatprep.subr.bf16.mxu0 %v1376
      %1619 = vmatpush1.bf16.msra.mxu0 %v1375
      %1620 = vmatprep.subr.bf16.mxu0 %v1384
      %1621 = vmatpush1.bf16.msra.mxu0 %v1383
      %1622 = vmatprep.subr.bf16.mxu0 0
      %1623 = vmatpush1.bf16.msra.mxu0 0
      %1624 = vmatprep.subr.bf16.mxu0 0
      %1625 = vmatpush1.bf16.msra.mxu0 0
      %1626 = vmatprep.subr.bf16.mxu0 0
      %1627 = vmatpush1.bf16.msra.mxu0 0
      %1628 = vmatprep.subr.bf16.mxu0 0
      %1629 = vmatpush1.bf16.msra.mxu0 0
      %1630 = vmatprep.subr.bf16.mxu0 0
      %1631 = vmatpush1.bf16.msra.mxu0 0
      %1632 = vmatprep.subr.bf16.mxu0 0
      %1633 = vmatpush1.bf16.msra.mxu0 0
      %1634 = vmatprep.subr.bf16.mxu0 0
      %1635 = vmatpush1.bf16.msra.mxu0 0
      %1636 = vmatprep.subr.bf16.mxu0 0
      %1637 = vmatpush1.bf16.msra.mxu0 0
      %1638 = vmatprep.subr.bf16.mxu0 0
      %1639 = vmatpush1.bf16.msra.mxu0 0
      %1640 = vmatprep.subr.bf16.mxu0 0
      %1641 = vmatpush1.bf16.msra.mxu0 0
      %1642 = vmatprep.subr.bf16.mxu0 0
      %1643 = vmatpush1.bf16.msra.mxu0 0
      %1644 = vmatprep.subr.bf16.mxu0 0
      %1645 = vmatpush1.bf16.msra.mxu0 0
      %1646 = vmatprep.mubr.bf16.mxu0 0
      %1647 = vmatmul.mubr.bf16.gmra.mrb[0].mxu0 %v1457
      %v1648 = vpop.f32.mrb[0].mxu0
      %v1649 = vadd.f32 %v1398, %v1648
      %v1650 = vpop.f32.mrb[0].mxu0
      %v1651 = vadd.f32 %v1398, %v1650
      %v1652 = vpop.f32.mrb[0].mxu0
      %v1653 = vadd.f32 %v1403, %v1652
      %v1654 = vpop.f32.mrb[0].mxu0
      %v1655 = vadd.f32 %v1403, %v1654
      %1656 = vmatprep.mubr.bf16.mxu0 0
      %1657 = vmatmul.mubr.bf16.gmra.mrb[0].mxu0 %v1460
      %v1658 = vpop.f32.mrb[0].mxu0
      %v1659 = vadd.f32 %v1408, %v1658
      %v1660 = vpop.f32.mrb[0].mxu0
      %v1661 = vadd.f32 %v1408, %v1660
      %v1662 = vpop.f32.mrb[0].mxu0
      %v1663 = vadd.f32 %v1413, %v1662
      %v1664 = vpop.f32.mrb[0].mxu0
      %v1665 = vadd.f32 %v1413, %v1664
      %1666 = vmatprep.mubr.bf16.mxu0 0
      %1667 = vmatmul.mubr.bf16.gmra.mrb[0].mxu0 %v1463
      %v1668 = vpop.f32.mrb[0].mxu0
      %v1669 = vadd.f32 %v1418, %v1668
      %v1670 = vpop.f32.mrb[0].mxu0
      %v1671 = vadd.f32 %v1418, %v1670
      %v1672 = vpop.f32.mrb[0].mxu0
      %v1673 = vadd.f32 %v1423, %v1672
      %v1674 = vpop.f32.mrb[0].mxu0
      %v1675 = vadd.f32 %v1423, %v1674
      %1676 = vmatprep.mubr.bf16.mxu0 0
      %1677 = vmatmul.mubr.bf16.gmra.mrb[0].mxu0 %v1466
      %v1678 = vpop.f32.mrb[0].mxu0
      %v1679 = vadd.f32 %v1428, %v1678
      %v1680 = vpop.f32.mrb[0].mxu0
      %v1681 = vadd.f32 %v1428, %v1680
      %v1682 = vpop.f32.mrb[0].mxu0
      %v1683 = vadd.f32 %v1433, %v1682
      %v1684 = vpop.f32.mrb[0].mxu0
      %v1685 = vadd.f32 %v1433, %v1684
      %1686 = vdwg.mxu0
      %1687 = vmatprep.subr.bf16.mxu0 %v1362
      %1688 = vmatpush1.bf16.msra.mxu0 %v1361
      %1689 = vmatprep.subr.bf16.mxu0 %v1370
      %1690 = vmatpush1.bf16.msra.mxu0 %v1369
      %1691 = vmatprep.subr.bf16.mxu0 %v1378
      %1692 = vmatpush1.bf16.msra.mxu0 %v1377
      %1693 = vmatprep.subr.bf16.mxu0 %v1386
      %1694 = vmatpush1.bf16.msra.mxu0 %v1385
      %1695 = vmatprep.subr.bf16.mxu0 0
      %1696 = vmatpush1.bf16.msra.mxu0 0
      %1697 = vmatprep.subr.bf16.mxu0 0
      %1698 = vmatpush1.bf16.msra.mxu0 0
      %1699 = vmatprep.subr.bf16.mxu0 0
      %1700 = vmatpush1.bf16.msra.mxu0 0
      %1701 = vmatprep.subr.bf16.mxu0 0
      %1702 = vmatpush1.bf16.msra.mxu0 0
      %1703 = vmatprep.subr.bf16.mxu0 0
      %1704 = vmatpush1.bf16.msra.mxu0 0
      %1705 = vmatprep.subr.bf16.mxu0 0
      %1706 = vmatpush1.bf16.msra.mxu0 0
      %1707 = vmatprep.subr.bf16.mxu0 0
      %1708 = vmatpush1.bf16.msra.mxu0 0
      %1709 = vmatprep.subr.bf16.mxu0 0
      %1710 = vmatpush1.bf16.msra.mxu0 0
      %1711 = vmatprep.subr.bf16.mxu0 0
      %1712 = vmatpush1.bf16.msra.mxu0 0
      %1713 = vmatprep.subr.bf16.mxu0 0
      %1714 = vmatpush1.bf16.msra.mxu0 0
      %1715 = vmatprep.subr.bf16.mxu0 0
      %1716 = vmatpush1.bf16.msra.mxu0 0
      %1717 = vmatprep.subr.bf16.mxu0 0
      %1718 = vmatpush1.bf16.msra.mxu0 0
      %1719 = vmatprep.mubr.bf16.mxu0 0
      %1720 = vmatmul.mubr.bf16.gmra.mrb[0].mxu0 %v1457
      %v1721 = vpop.f32.mrb[0].mxu0
      %v1722 = vadd.f32 %v1398, %v1721
      %v1723 = vpop.f32.mrb[0].mxu0
      %v1724 = vadd.f32 %v1398, %v1723
      %v1725 = vpop.f32.mrb[0].mxu0
      %v1726 = vadd.f32 %v1403, %v1725
      %v1727 = vpop.f32.mrb[0].mxu0
      %v1728 = vadd.f32 %v1403, %v1727
      %1729 = vmatprep.mubr.bf16.mxu0 0
      %1730 = vmatmul.mubr.bf16.gmra.mrb[0].mxu0 %v1460
      %v1731 = vpop.f32.mrb[0].mxu0
      %v1732 = vadd.f32 %v1408, %v1731
      %v1733 = vpop.f32.mrb[0].mxu0
      %v1734 = vadd.f32 %v1408, %v1733
      %v1735 = vpop.f32.mrb[0].mxu0
      %v1736 = vadd.f32 %v1413, %v1735
      %v1737 = vpop.f32.mrb[0].mxu0
      %v1738 = vadd.f32 %v1413, %v1737
      %1739 = vmatprep.mubr.bf16.mxu0 0
      %1740 = vmatmul.mubr.bf16.gmra.mrb[0].mxu0 %v1463
      %v1741 = vpop.f32.mrb[0].mxu0
      %v1742 = vadd.f32 %v1418, %v1741
      %v1743 = vpop.f32.mrb[0].mxu0
      %v1744 = vadd.f32 %v1418, %v1743
      %v1745 = vpop.f32.mrb[0].mxu0
      %v1746 = vadd.f32 %v1423, %v1745
      %v1747 = vpop.f32.mrb[0].mxu0
      %v1748 = vadd.f32 %v1423, %v1747
      %1749 = vmatprep.mubr.bf16.mxu0 0
      %1750 = vmatmul.mubr.bf16.gmra.mrb[0].mxu0 %v1466
      %v1751 = vpop.f32.mrb[0].mxu0
      %v1752 = vadd.f32 %v1428, %v1751
      %v1753 = vpop.f32.mrb[0].mxu0
      %v1754 = vadd.f32 %v1428, %v1753
      %v1755 = vpop.f32.mrb[0].mxu0
      %v1756 = vadd.f32 %v1433, %v1755
      %v1757 = vpop.f32.mrb[0].mxu0
      %v1758 = vadd.f32 %v1433, %v1757
      %1759 = vdwg.mxu0
      %v1760 = vmax.f32 %v1503, 0.0
      %v1761 = vmax.f32 %v1505, 0.0
      %v1762 = vmax.f32 %v1576, 0.0
      %v1763 = vmax.f32 %v1578, 0.0
      %v1764 = vmax.f32 %v1649, 0.0
      %v1765 = vmax.f32 %v1651, 0.0
      %v1766 = vmax.f32 %v1722, 0.0
      %v1767 = vmax.f32 %v1724, 0.0
      %v1768 = vmax.f32 %v1507, 0.0
      %v1769 = vmax.f32 %v1509, 0.0
      %v1770 = vmax.f32 %v1580, 0.0
      %v1771 = vmax.f32 %v1582, 0.0
      %v1772 = vmax.f32 %v1653, 0.0
      %v1773 = vmax.f32 %v1655, 0.0
      %v1774 = vmax.f32 %v1726, 0.0
      %v1775 = vmax.f32 %v1728, 0.0
      %v1776 = vmax.f32 %v1513, 0.0
      %v1777 = vmax.f32 %v1515, 0.0
      %v1778 = vmax.f32 %v1586, 0.0
      %v1779 = vmax.f32 %v1588, 0.0
      %v1780 = vmax.f32 %v1659, 0.0
      %v1781 = vmax.f32 %v1661, 0.0
      %v1782 = vmax.f32 %v1732, 0.0
      %v1783 = vmax.f32 %v1734, 0.0
      %v1784 = vmax.f32 %v1517, 0.0
      %v1785 = vmax.f32 %v1519, 0.0
      %v1786 = vmax.f32 %v1590, 0.0
      %v1787 = vmax.f32 %v1592, 0.0
      %v1788 = vmax.f32 %v1663, 0.0
      %v1789 = vmax.f32 %v1665, 0.0
      %v1790 = vmax.f32 %v1736, 0.0
      %v1791 = vmax.f32 %v1738, 0.0
      %v1792 = vmax.f32 %v1523, 0.0
      %v1793 = vmax.f32 %v1525, 0.0
      %v1794 = vmax.f32 %v1596, 0.0
      %v1795 = vmax.f32 %v1598, 0.0
      %v1796 = vmax.f32 %v1669, 0.0
      %v1797 = vmax.f32 %v1671, 0.0
      %v1798 = vmax.f32 %v1742, 0.0
      %v1799 = vmax.f32 %v1744, 0.0
      %v1800 = vmax.f32 %v1527, 0.0
      %v1801 = vmax.f32 %v1529, 0.0
      %v1802 = vmax.f32 %v1600, 0.0
      %v1803 = vmax.f32 %v1602, 0.0
      %v1804 = vmax.f32 %v1673, 0.0
      %v1805 = vmax.f32 %v1675, 0.0
      %v1806 = vmax.f32 %v1746, 0.0
      %v1807 = vmax.f32 %v1748, 0.0
      %v1808 = vmax.f32 %v1533, 0.0
      %v1809 = vmax.f32 %v1535, 0.0
      %v1810 = vmax.f32 %v1606, 0.0
      %v1811 = vmax.f32 %v1608, 0.0
      %v1812 = vmax.f32 %v1679, 0.0
      %v1813 = vmax.f32 %v1681, 0.0
      %v1814 = vmax.f32 %v1752, 0.0
      %v1815 = vmax.f32 %v1754, 0.0
      %v1816 = vmax.f32 %v1537, 0.0
      %v1817 = vmax.f32 %v1539, 0.0
      %v1818 = vmax.f32 %v1610, 0.0
      %v1819 = vmax.f32 %v1612, 0.0
      %v1820 = vmax.f32 %v1683, 0.0
      %v1821 = vmax.f32 %v1685, 0.0
      %v1822 = vmax.f32 %v1756, 0.0
      %v1823 = vmax.f32 %v1758, 0.0
      %s1824 = scalar_lea.vmem %s3, 32
      %v1825 = vld [vmem:[%s1824] sm:$0xf]
      %v1826 = vld [vmem:[%s1824 + $0x4] sm:$0xf]
      %v1827 = vld [vmem:[%s1824 + $0x8] sm:$0xf]
      %v1828 = vld [vmem:[%s1824 + $0xc] sm:$0xf]
      %v1829 = vld [vmem:[%s1824 + $0x10] sm:$0xf]
      %v1830 = vld [vmem:[%s1824 + $0x14] sm:$0xf]
      %v1831 = vld [vmem:[%s1824 + $0x18] sm:$0xf]
      %v1832 = vld [vmem:[%s1824 + $0x1c] sm:$0xf]
      %v1833 = vpack.c.bf16 %v1768, %v1760
      %v1834 = vpack.c.bf16 %v1769, %v1761
      %v1835 = vpack.c.bf16 %v1770, %v1762
      %v1836 = vpack.c.bf16 %v1771, %v1763
      %v1837 = vpack.c.bf16 %v1772, %v1764
      %v1838 = vpack.c.bf16 %v1773, %v1765
      %v1839 = vpack.c.bf16 %v1774, %v1766
      %v1840 = vpack.c.bf16 %v1775, %v1767
      %v1841 = vpack.c.bf16 %v1784, %v1776
      %v1842 = vpack.c.bf16 %v1785, %v1777
      %v1843 = vpack.c.bf16 %v1786, %v1778
      %v1844 = vpack.c.bf16 %v1787, %v1779
      %v1845 = vpack.c.bf16 %v1788, %v1780
      %v1846 = vpack.c.bf16 %v1789, %v1781
      %v1847 = vpack.c.bf16 %v1790, %v1782
      %v1848 = vpack.c.bf16 %v1791, %v1783
      %v1849 = vpack.c.bf16 %v1800, %v1792
      %v1850 = vpack.c.bf16 %v1801, %v1793
      %v1851 = vpack.c.bf16 %v1802, %v1794
      %v1852 = vpack.c.bf16 %v1803, %v1795
      %v1853 = vpack.c.bf16 %v1804, %v1796
      %v1854 = vpack.c.bf16 %v1805, %v1797
      %v1855 = vpack.c.bf16 %v1806, %v1798
      %v1856 = vpack.c.bf16 %v1807, %v1799
      %v1857 = vpack.c.bf16 %v1816, %v1808
      %v1858 = vpack.c.bf16 %v1817, %v1809
      %v1859 = vpack.c.bf16 %v1818, %v1810
      %v1860 = vpack.c.bf16 %v1819, %v1811
      %v1861 = vpack.c.bf16 %v1820, %v1812
      %v1862 = vpack.c.bf16 %v1821, %v1813
      %v1863 = vpack.c.bf16 %v1822, %v1814
      %v1864 = vpack.c.bf16 %v1823, %v1815
      %s1865 = scalar_lea.vmem %s4, 64
      %v1866 = vld [vmem:[%s1865] sm:$0xff]
      %v1867 = vld [vmem:[%s1865 + $0x8] sm:$0xff]
      %v1868 = vld [vmem:[%s1865 + $0x10] sm:$0xff]
      %v1869 = vld [vmem:[%s1865 + $0x18] sm:$0xff]
      %v1870 = vld [vmem:[%s1865 + $0x20] sm:$0xff]
      %v1871 = vld [vmem:[%s1865 + $0x28] sm:$0xff]
      %v1872 = vld [vmem:[%s1865 + $0x30] sm:$0xff]
      %v1873 = vld [vmem:[%s1865 + $0x38] sm:$0xff]
      %1875 = vset.pattern.permute.xlu0 0
      %1876 = vperm.xlu0 %1875, %v1866
      %v1877 = vpop.permute.xlu0 %1876
      %1880 = vset.pattern.permute.xlu0 0
      %1881 = vperm.xlu0 %1880, %v1867
      %v1882 = vpop.permute.xlu0 %1881
      %1885 = vset.pattern.permute.xlu0 0
      %1886 = vperm.xlu0 %1885, %v1868
      %v1887 = vpop.permute.xlu0 %1886
      %1890 = vset.pattern.permute.xlu0 0
      %1891 = vperm.xlu0 %1890, %v1869
      %v1892 = vpop.permute.xlu0 %1891
      %1895 = vset.pattern.permute.xlu0 0
      %1896 = vperm.xlu0 %1895, %v1870
      %v1897 = vpop.permute.xlu0 %1896
      %1900 = vset.pattern.permute.xlu0 0
      %1901 = vperm.xlu0 %1900, %v1871
      %v1902 = vpop.permute.xlu0 %1901
      %1905 = vset.pattern.permute.xlu0 0
      %1906 = vperm.xlu0 %1905, %v1872
      %v1907 = vpop.permute.xlu0 %1906
      %1910 = vset.pattern.permute.xlu0 0
      %1911 = vperm.xlu0 %1910, %v1873
      %v1912 = vpop.permute.xlu0 %1911
      %v1922 = vunpack.c.l.b16 %v1825
      %v1923 = vunpack.c.l.b16 %v1826
      %v1924 = vunpack.c.l.b16 %v1827
      %v1925 = vunpack.c.l.b16 %v1828
      %v1926 = vunpack.c.l.b16 %v1829
      %v1927 = vunpack.c.l.b16 %v1830
      %v1928 = vunpack.c.l.b16 %v1831
      %v1929 = vunpack.c.l.b16 %v1832
      %v1930 = vpack.c.b16 %v1923, %v1922
      %v1931 = vpack.c.b16 %v1925, %v1924
      %v1932 = vpack.c.b16 %v1927, %v1926
      %v1933 = vpack.c.b16 %v1929, %v1928
      %v1935 = vsel %vm1455, %v1930, 0
      %v1938 = vsel %vm1455, %v1931, 0
      %v1941 = vsel %vm1455, %v1932, 0
      %v1944 = vsel %vm1455, %v1933, 0
      %1946 = vmatprep.subr.bf16.mxu0 %v1834
      %1947 = vmatpush1.bf16.msra.mxu0 %v1833
      %1948 = vmatprep.subr.bf16.mxu0 %v1842
      %1949 = vmatpush1.bf16.msra.mxu0 %v1841
      %1950 = vmatprep.subr.bf16.mxu0 %v1850
      %1951 = vmatpush1.bf16.msra.mxu0 %v1849
      %1952 = vmatprep.subr.bf16.mxu0 %v1858
      %1953 = vmatpush1.bf16.msra.mxu0 %v1857
      %1954 = vmatprep.subr.bf16.mxu0 0
      %1955 = vmatpush1.bf16.msra.mxu0 0
      %1956 = vmatprep.subr.bf16.mxu0 0
      %1957 = vmatpush1.bf16.msra.mxu0 0
      %1958 = vmatprep.subr.bf16.mxu0 0
      %1959 = vmatpush1.bf16.msra.mxu0 0
      %1960 = vmatprep.subr.bf16.mxu0 0
      %1961 = vmatpush1.bf16.msra.mxu0 0
      %1962 = vmatprep.subr.bf16.mxu0 0
      %1963 = vmatpush1.bf16.msra.mxu0 0
      %1964 = vmatprep.subr.bf16.mxu0 0
      %1965 = vmatpush1.bf16.msra.mxu0 0
      %1966 = vmatprep.subr.bf16.mxu0 0
      %1967 = vmatpush1.bf16.msra.mxu0 0
      %1968 = vmatprep.subr.bf16.mxu0 0
      %1969 = vmatpush1.bf16.msra.mxu0 0
      %1970 = vmatprep.subr.bf16.mxu0 0
      %1971 = vmatpush1.bf16.msra.mxu0 0
      %1972 = vmatprep.subr.bf16.mxu0 0
      %1973 = vmatpush1.bf16.msra.mxu0 0
      %1974 = vmatprep.subr.bf16.mxu0 0
      %1975 = vmatpush1.bf16.msra.mxu0 0
      %1976 = vmatprep.subr.bf16.mxu0 0
      %1977 = vmatpush1.bf16.msra.mxu0 0
      %1978 = vmatprep.mubr.bf16.mxu0 0
      %1979 = vmatmul.mubr.bf16.gmra.mrb[0].mxu0 %v1935
      %v1980 = vpop.f32.mrb[0].mxu0
      %v1981 = vadd.f32 %v1877, %v1980
      %v1982 = vpop.f32.mrb[0].mxu0
      %v1983 = vadd.f32 %v1877, %v1982
      %v1984 = vpop.f32.mrb[0].mxu0
      %v1985 = vadd.f32 %v1882, %v1984
      %v1986 = vpop.f32.mrb[0].mxu0
      %v1987 = vadd.f32 %v1882, %v1986
      %1988 = vmatprep.mubr.bf16.mxu0 0
      %1989 = vmatmul.mubr.bf16.gmra.mrb[0].mxu0 %v1938
      %v1990 = vpop.f32.mrb[0].mxu0
      %v1991 = vadd.f32 %v1887, %v1990
      %v1992 = vpop.f32.mrb[0].mxu0
      %v1993 = vadd.f32 %v1887, %v1992
      %v1994 = vpop.f32.mrb[0].mxu0
      %v1995 = vadd.f32 %v1892, %v1994
      %v1996 = vpop.f32.mrb[0].mxu0
      %v1997 = vadd.f32 %v1892, %v1996
      %1998 = vmatprep.mubr.bf16.mxu0 0
      %1999 = vmatmul.mubr.bf16.gmra.mrb[0].mxu0 %v1941
      %v2000 = vpop.f32.mrb[0].mxu0
      %v2001 = vadd.f32 %v1897, %v2000
      %v2002 = vpop.f32.mrb[0].mxu0
      %v2003 = vadd.f32 %v1897, %v2002
      %v2004 = vpop.f32.mrb[0].mxu0
      %v2005 = vadd.f32 %v1902, %v2004
      %v2006 = vpop.f32.mrb[0].mxu0
      %v2007 = vadd.f32 %v1902, %v2006
      %2008 = vmatprep.mubr.bf16.mxu0 0
      %2009 = vmatmul.mubr.bf16.gmra.mrb[0].mxu0 %v1944
      %v2010 = vpop.f32.mrb[0].mxu0
      %v2011 = vadd.f32 %v1907, %v2010
      %v2012 = vpop.f32.mrb[0].mxu0
      %v2013 = vadd.f32 %v1907, %v2012
      %v2014 = vpop.f32.mrb[0].mxu0
      %v2015 = vadd.f32 %v1912, %v2014
      %v2016 = vpop.f32.mrb[0].mxu0
      %v2017 = vadd.f32 %v1912, %v2016
      %2018 = vdwg.mxu0
      %2019 = vmatprep.subr.bf16.mxu0 %v1836
      %2020 = vmatpush1.bf16.msra.mxu0 %v1835
      %2021 = vmatprep.subr.bf16.mxu0 %v1844
      %2022 = vmatpush1.bf16.msra.mxu0 %v1843
      %2023 = vmatprep.subr.bf16.mxu0 %v1852
      %2024 = vmatpush1.bf16.msra.mxu0 %v1851
      %2025 = vmatprep.subr.bf16.mxu0 %v1860
      %2026 = vmatpush1.bf16.msra.mxu0 %v1859
      %2027 = vmatprep.subr.bf16.mxu0 0
      %2028 = vmatpush1.bf16.msra.mxu0 0
      %2029 = vmatprep.subr.bf16.mxu0 0
      %2030 = vmatpush1.bf16.msra.mxu0 0
      %2031 = vmatprep.subr.bf16.mxu0 0
      %2032 = vmatpush1.bf16.msra.mxu0 0
      %2033 = vmatprep.subr.bf16.mxu0 0
      %2034 = vmatpush1.bf16.msra.mxu0 0
      %2035 = vmatprep.subr.bf16.mxu0 0
      %2036 = vmatpush1.bf16.msra.mxu0 0
      %2037 = vmatprep.subr.bf16.mxu0 0
      %2038 = vmatpush1.bf16.msra.mxu0 0
      %2039 = vmatprep.subr.bf16.mxu0 0
      %2040 = vmatpush1.bf16.msra.mxu0 0
      %2041 = vmatprep.subr.bf16.mxu0 0
      %2042 = vmatpush1.bf16.msra.mxu0 0
      %2043 = vmatprep.subr.bf16.mxu0 0
      %2044 = vmatpush1.bf16.msra.mxu0 0
      %2045 = vmatprep.subr.bf16.mxu0 0
      %2046 = vmatpush1.bf16.msra.mxu0 0
      %2047 = vmatprep.subr.bf16.mxu0 0
      %2048 = vmatpush1.bf16.msra.mxu0 0
      %2049 = vmatprep.subr.bf16.mxu0 0
      %2050 = vmatpush1.bf16.msra.mxu0 0
      %2051 = vmatprep.mubr.bf16.mxu0 0
      %2052 = vmatmul.mubr.bf16.gmra.mrb[0].mxu0 %v1935
      %v2053 = vpop.f32.mrb[0].mxu0
      %v2054 = vadd.f32 %v1877, %v2053
      %v2055 = vpop.f32.mrb[0].mxu0
      %v2056 = vadd.f32 %v1877, %v2055
      %v2057 = vpop.f32.mrb[0].mxu0
      %v2058 = vadd.f32 %v1882, %v2057
      %v2059 = vpop.f32.mrb[0].mxu0
      %v2060 = vadd.f32 %v1882, %v2059
      %2061 = vmatprep.mubr.bf16.mxu0 0
      %2062 = vmatmul.mubr.bf16.gmra.mrb[0].mxu0 %v1938
      %v2063 = vpop.f32.mrb[0].mxu0
      %v2064 = vadd.f32 %v1887, %v2063
      %v2065 = vpop.f32.mrb[0].mxu0
      %v2066 = vadd.f32 %v1887, %v2065
      %v2067 = vpop.f32.mrb[0].mxu0
      %v2068 = vadd.f32 %v1892, %v2067
      %v2069 = vpop.f32.mrb[0].mxu0
      %v2070 = vadd.f32 %v1892, %v2069
      %2071 = vmatprep.mubr.bf16.mxu0 0
      %2072 = vmatmul.mubr.bf16.gmra.mrb[0].mxu0 %v1941
      %v2073 = vpop.f32.mrb[0].mxu0
      %v2074 = vadd.f32 %v1897, %v2073
      %v2075 = vpop.f32.mrb[0].mxu0
      %v2076 = vadd.f32 %v1897, %v2075
      %v2077 = vpop.f32.mrb[0].mxu0
      %v2078 = vadd.f32 %v1902, %v2077
      %v2079 = vpop.f32.mrb[0].mxu0
      %v2080 = vadd.f32 %v1902, %v2079
      %2081 = vmatprep.mubr.bf16.mxu0 0
      %2082 = vmatmul.mubr.bf16.gmra.mrb[0].mxu0 %v1944
      %v2083 = vpop.f32.mrb[0].mxu0
      %v2084 = vadd.f32 %v1907, %v2083
      %v2085 = vpop.f32.mrb[0].mxu0
      %v2086 = vadd.f32 %v1907, %v2085
      %v2087 = vpop.f32.mrb[0].mxu0
      %v2088 = vadd.f32 %v1912, %v2087
      %v2089 = vpop.f32.mrb[0].mxu0
      %v2090 = vadd.f32 %v1912, %v2089
      %2091 = vdwg.mxu0
      %2092 = vmatprep.subr.bf16.mxu0 %v1838
      %2093 = vmatpush1.bf16.msra.mxu0 %v1837
      %2094 = vmatprep.subr.bf16.mxu0 %v1846
      %2095 = vmatpush1.bf16.msra.mxu0 %v1845
      %2096 = vmatprep.subr.bf16.mxu0 %v1854
      %2097 = vmatpush1.bf16.msra.mxu0 %v1853
      %2098 = vmatprep.subr.bf16.mxu0 %v1862
      %2099 = vmatpush1.bf16.msra.mxu0 %v1861
      %2100 = vmatprep.subr.bf16.mxu0 0
      %2101 = vmatpush1.bf16.msra.mxu0 0
      %2102 = vmatprep.subr.bf16.mxu0 0
      %2103 = vmatpush1.bf16.msra.mxu0 0
      %2104 = vmatprep.subr.bf16.mxu0 0
      %2105 = vmatpush1.bf16.msra.mxu0 0
      %2106 = vmatprep.subr.bf16.mxu0 0
      %2107 = vmatpush1.bf16.msra.mxu0 0
      %2108 = vmatprep.subr.bf16.mxu0 0
      %2109 = vmatpush1.bf16.msra.mxu0 0
      %2110 = vmatprep.subr.bf16.mxu0 0
      %2111 = vmatpush1.bf16.msra.mxu0 0
      %2112 = vmatprep.subr.bf16.mxu0 0
      %2113 = vmatpush1.bf16.msra.mxu0 0
      %2114 = vmatprep.subr.bf16.mxu0 0
      %2115 = vmatpush1.bf16.msra.mxu0 0
      %2116 = vmatprep.subr.bf16.mxu0 0
      %2117 = vmatpush1.bf16.msra.mxu0 0
      %2118 = vmatprep.subr.bf16.mxu0 0
      %2119 = vmatpush1.bf16.msra.mxu0 0
      %2120 = vmatprep.subr.bf16.mxu0 0
      %2121 = vmatpush1.bf16.msra.mxu0 0
      %2122 = vmatprep.subr.bf16.mxu0 0
      %2123 = vmatpush1.bf16.msra.mxu0 0
      %2124 = vmatprep.mubr.bf16.mxu0 0
      %2125 = vmatmul.mubr.bf16.gmra.mrb[0].mxu0 %v1935
      %v2126 = vpop.f32.mrb[0].mxu0
      %v2127 = vadd.f32 %v1877, %v2126
      %v2128 = vpop.f32.mrb[0].mxu0
      %v2129 = vadd.f32 %v1877, %v2128
      %v2130 = vpop.f32.mrb[0].mxu0
      %v2131 = vadd.f32 %v1882, %v2130
      %v2132 = vpop.f32.mrb[0].mxu0
      %v2133 = vadd.f32 %v1882, %v2132
      %2134 = vmatprep.mubr.bf16.mxu0 0
      %2135 = vmatmul.mubr.bf16.gmra.mrb[0].mxu0 %v1938
      %v2136 = vpop.f32.mrb[0].mxu0
      %v2137 = vadd.f32 %v1887, %v2136
      %v2138 = vpop.f32.mrb[0].mxu0
      %v2139 = vadd.f32 %v1887, %v2138
      %v2140 = vpop.f32.mrb[0].mxu0
      %v2141 = vadd.f32 %v1892, %v2140
      %v2142 = vpop.f32.mrb[0].mxu0
      %v2143 = vadd.f32 %v1892, %v2142
      %2144 = vmatprep.mubr.bf16.mxu0 0
      %2145 = vmatmul.mubr.bf16.gmra.mrb[0].mxu0 %v1941
      %v2146 = vpop.f32.mrb[0].mxu0
      %v2147 = vadd.f32 %v1897, %v2146
      %v2148 = vpop.f32.mrb[0].mxu0
      %v2149 = vadd.f32 %v1897, %v2148
      %v2150 = vpop.f32.mrb[0].mxu0
      %v2151 = vadd.f32 %v1902, %v2150
      %v2152 = vpop.f32.mrb[0].mxu0
      %v2153 = vadd.f32 %v1902, %v2152
      %2154 = vmatprep.mubr.bf16.mxu0 0
      %2155 = vmatmul.mubr.bf16.gmra.mrb[0].mxu0 %v1944
      %v2156 = vpop.f32.mrb[0].mxu0
      %v2157 = vadd.f32 %v1907, %v2156
      %v2158 = vpop.f32.mrb[0].mxu0
      %v2159 = vadd.f32 %v1907, %v2158
      %v2160 = vpop.f32.mrb[0].mxu0
      %v2161 = vadd.f32 %v1912, %v2160
      %v2162 = vpop.f32.mrb[0].mxu0
      %v2163 = vadd.f32 %v1912, %v2162
      %2164 = vdwg.mxu0
      %2165 = vmatprep.subr.bf16.mxu0 %v1840
      %2166 = vmatpush1.bf16.msra.mxu0 %v1839
      %2167 = vmatprep.subr.bf16.mxu0 %v1848
      %2168 = vmatpush1.bf16.msra.mxu0 %v1847
      %2169 = vmatprep.subr.bf16.mxu0 %v1856
      %2170 = vmatpush1.bf16.msra.mxu0 %v1855
      %2171 = vmatprep.subr.bf16.mxu0 %v1864
      %2172 = vmatpush1.bf16.msra.mxu0 %v1863
      %2173 = vmatprep.subr.bf16.mxu0 0
      %2174 = vmatpush1.bf16.msra.mxu0 0
      %2175 = vmatprep.subr.bf16.mxu0 0
      %2176 = vmatpush1.bf16.msra.mxu0 0
      %2177 = vmatprep.subr.bf16.mxu0 0
      %2178 = vmatpush1.bf16.msra.mxu0 0
      %2179 = vmatprep.subr.bf16.mxu0 0
      %2180 = vmatpush1.bf16.msra.mxu0 0
      %2181 = vmatprep.subr.bf16.mxu0 0
      %2182 = vmatpush1.bf16.msra.mxu0 0
      %2183 = vmatprep.subr.bf16.mxu0 0
      %2184 = vmatpush1.bf16.msra.mxu0 0
      %2185 = vmatprep.subr.bf16.mxu0 0
      %2186 = vmatpush1.bf16.msra.mxu0 0
      %2187 = vmatprep.subr.bf16.mxu0 0
      %2188 = vmatpush1.bf16.msra.mxu0 0
      %2189 = vmatprep.subr.bf16.mxu0 0
      %2190 = vmatpush1.bf16.msra.mxu0 0
      %2191 = vmatprep.subr.bf16.mxu0 0
      %2192 = vmatpush1.bf16.msra.mxu0 0
      %2193 = vmatprep.subr.bf16.mxu0 0
      %2194 = vmatpush1.bf16.msra.mxu0 0
      %2195 = vmatprep.subr.bf16.mxu0 0
      %2196 = vmatpush1.bf16.msra.mxu0 0
      %2197 = vmatprep.mubr.bf16.mxu0 0
      %2198 = vmatmul.mubr.bf16.gmra.mrb[0].mxu0 %v1935
      %v2199 = vpop.f32.mrb[0].mxu0
      %v2200 = vadd.f32 %v1877, %v2199
      %v2201 = vpop.f32.mrb[0].mxu0
      %v2202 = vadd.f32 %v1877, %v2201
      %v2203 = vpop.f32.mrb[0].mxu0
      %v2204 = vadd.f32 %v1882, %v2203
      %v2205 = vpop.f32.mrb[0].mxu0
      %v2206 = vadd.f32 %v1882, %v2205
      %2207 = vmatprep.mubr.bf16.mxu0 0
      %2208 = vmatmul.mubr.bf16.gmra.mrb[0].mxu0 %v1938
      %v2209 = vpop.f32.mrb[0].mxu0
      %v2210 = vadd.f32 %v1887, %v2209
      %v2211 = vpop.f32.mrb[0].mxu0
      %v2212 = vadd.f32 %v1887, %v2211
      %v2213 = vpop.f32.mrb[0].mxu0
      %v2214 = vadd.f32 %v1892, %v2213
      %v2215 = vpop.f32.mrb[0].mxu0
      %v2216 = vadd.f32 %v1892, %v2215
      %2217 = vmatprep.mubr.bf16.mxu0 0
      %2218 = vmatmul.mubr.bf16.gmra.mrb[0].mxu0 %v1941
      %v2219 = vpop.f32.mrb[0].mxu0
      %v2220 = vadd.f32 %v1897, %v2219
      %v2221 = vpop.f32.mrb[0].mxu0
      %v2222 = vadd.f32 %v1897, %v2221
      %v2223 = vpop.f32.mrb[0].mxu0
      %v2224 = vadd.f32 %v1902, %v2223
      %v2225 = vpop.f32.mrb[0].mxu0
      %v2226 = vadd.f32 %v1902, %v2225
      %2227 = vmatprep.mubr.bf16.mxu0 0
      %2228 = vmatmul.mubr.bf16.gmra.mrb[0].mxu0 %v1944
      %v2229 = vpop.f32.mrb[0].mxu0
      %v2230 = vadd.f32 %v1907, %v2229
      %v2231 = vpop.f32.mrb[0].mxu0
      %v2232 = vadd.f32 %v1907, %v2231
      %v2233 = vpop.f32.mrb[0].mxu0
      %v2234 = vadd.f32 %v1912, %v2233
      %v2235 = vpop.f32.mrb[0].mxu0
      %v2236 = vadd.f32 %v1912, %v2235
      %2237 = vdwg.mxu0
      %v2238 = vmax.f32 %v1981, 0.0
      %v2239 = vmax.f32 %v1983, 0.0
      %v2240 = vmax.f32 %v2054, 0.0
      %v2241 = vmax.f32 %v2056, 0.0
      %v2242 = vmax.f32 %v2127, 0.0
      %v2243 = vmax.f32 %v2129, 0.0
      %v2244 = vmax.f32 %v2200, 0.0
      %v2245 = vmax.f32 %v2202, 0.0
      %v2246 = vmax.f32 %v1985, 0.0
      %v2247 = vmax.f32 %v1987, 0.0
      %v2248 = vmax.f32 %v2058, 0.0
      %v2249 = vmax.f32 %v2060, 0.0
      %v2250 = vmax.f32 %v2131, 0.0
      %v2251 = vmax.f32 %v2133, 0.0
      %v2252 = vmax.f32 %v2204, 0.0
      %v2253 = vmax.f32 %v2206, 0.0
      %v2254 = vmax.f32 %v1991, 0.0
      %v2255 = vmax.f32 %v1993, 0.0
      %v2256 = vmax.f32 %v2064, 0.0
      %v2257 = vmax.f32 %v2066, 0.0
      %v2258 = vmax.f32 %v2137, 0.0
      %v2259 = vmax.f32 %v2139, 0.0
      %v2260 = vmax.f32 %v2210, 0.0
      %v2261 = vmax.f32 %v2212, 0.0
      %v2262 = vmax.f32 %v1995, 0.0
      %v2263 = vmax.f32 %v1997, 0.0
      %v2264 = vmax.f32 %v2068, 0.0
      %v2265 = vmax.f32 %v2070, 0.0
      %v2266 = vmax.f32 %v2141, 0.0
      %v2267 = vmax.f32 %v2143, 0.0
      %v2268 = vmax.f32 %v2214, 0.0
      %v2269 = vmax.f32 %v2216, 0.0
      %v2270 = vmax.f32 %v2001, 0.0
      %v2271 = vmax.f32 %v2003, 0.0
      %v2272 = vmax.f32 %v2074, 0.0
      %v2273 = vmax.f32 %v2076, 0.0
      %v2274 = vmax.f32 %v2147, 0.0
      %v2275 = vmax.f32 %v2149, 0.0
      %v2276 = vmax.f32 %v2220, 0.0
      %v2277 = vmax.f32 %v2222, 0.0
      %v2278 = vmax.f32 %v2005, 0.0
      %v2279 = vmax.f32 %v2007, 0.0
      %v2280 = vmax.f32 %v2078, 0.0
      %v2281 = vmax.f32 %v2080, 0.0
      %v2282 = vmax.f32 %v2151, 0.0
      %v2283 = vmax.f32 %v2153, 0.0
      %v2284 = vmax.f32 %v2224, 0.0
      %v2285 = vmax.f32 %v2226, 0.0
      %v2286 = vmax.f32 %v2011, 0.0
      %v2287 = vmax.f32 %v2013, 0.0
      %v2288 = vmax.f32 %v2084, 0.0
      %v2289 = vmax.f32 %v2086, 0.0
      %v2290 = vmax.f32 %v2157, 0.0
      %v2291 = vmax.f32 %v2159, 0.0
      %v2292 = vmax.f32 %v2230, 0.0
      %v2293 = vmax.f32 %v2232, 0.0
      %v2294 = vmax.f32 %v2015, 0.0
      %v2295 = vmax.f32 %v2017, 0.0
      %v2296 = vmax.f32 %v2088, 0.0
      %v2297 = vmax.f32 %v2090, 0.0
      %v2298 = vmax.f32 %v2161, 0.0
      %v2299 = vmax.f32 %v2163, 0.0
      %v2300 = vmax.f32 %v2234, 0.0
      %v2301 = vmax.f32 %v2236, 0.0
      %v2302 = vld [vmem:[%s5] sm:$0xf]
      %v2303 = vpack.c.bf16 %v2246, %v2238
      %v2304 = vpack.c.bf16 %v2247, %v2239
      %v2305 = vpack.c.bf16 %v2248, %v2240
      %v2306 = vpack.c.bf16 %v2249, %v2241
      %v2307 = vpack.c.bf16 %v2250, %v2242
      %v2308 = vpack.c.bf16 %v2251, %v2243
      %v2309 = vpack.c.bf16 %v2252, %v2244
      %v2310 = vpack.c.bf16 %v2253, %v2245
      %v2311 = vpack.c.bf16 %v2262, %v2254
      %v2312 = vpack.c.bf16 %v2263, %v2255
      %v2313 = vpack.c.bf16 %v2264, %v2256
      %v2314 = vpack.c.bf16 %v2265, %v2257
      %v2315 = vpack.c.bf16 %v2266, %v2258
      %v2316 = vpack.c.bf16 %v2267, %v2259
      %v2317 = vpack.c.bf16 %v2268, %v2260
      %v2318 = vpack.c.bf16 %v2269, %v2261
      %v2319 = vpack.c.bf16 %v2278, %v2270
      %v2320 = vpack.c.bf16 %v2279, %v2271
      %v2321 = vpack.c.bf16 %v2280, %v2272
      %v2322 = vpack.c.bf16 %v2281, %v2273
      %v2323 = vpack.c.bf16 %v2282, %v2274
      %v2324 = vpack.c.bf16 %v2283, %v2275
      %v2325 = vpack.c.bf16 %v2284, %v2276
      %v2326 = vpack.c.bf16 %v2285, %v2277
      %v2327 = vpack.c.bf16 %v2294, %v2286
      %v2328 = vpack.c.bf16 %v2295, %v2287
      %v2329 = vpack.c.bf16 %v2296, %v2288
      %v2330 = vpack.c.bf16 %v2297, %v2289
      %v2331 = vpack.c.bf16 %v2298, %v2290
      %v2332 = vpack.c.bf16 %v2299, %v2291
      %v2333 = vpack.c.bf16 %v2300, %v2292
      %v2334 = vpack.c.bf16 %v2301, %v2293
      %v2335 = vld [vmem:[%s6] sm:$0xff]
      %2337 = vset.pattern.permute.xlu0 0
      %2338 = vperm.xlu0 %2337, %v2335
      %v2339 = vpop.permute.xlu0 %2338
      %v2342 = vsel %vm1455, %v2302, 0
      %2344 = vmatprep.subr.bf16.mxu0 %v2304
      %2345 = vmatpush1.bf16.msra.mxu0 %v2303
      %2346 = vmatprep.subr.bf16.mxu0 %v2312
      %2347 = vmatpush1.bf16.msra.mxu0 %v2311
      %2348 = vmatprep.subr.bf16.mxu0 %v2320
      %2349 = vmatpush1.bf16.msra.mxu0 %v2319
      %2350 = vmatprep.subr.bf16.mxu0 %v2328
      %2351 = vmatpush1.bf16.msra.mxu0 %v2327
      %2352 = vmatprep.subr.bf16.mxu0 0
      %2353 = vmatpush1.bf16.msra.mxu0 0
      %2354 = vmatprep.subr.bf16.mxu0 0
      %2355 = vmatpush1.bf16.msra.mxu0 0
      %2356 = vmatprep.subr.bf16.mxu0 0
      %2357 = vmatpush1.bf16.msra.mxu0 0
      %2358 = vmatprep.subr.bf16.mxu0 0
      %2359 = vmatpush1.bf16.msra.mxu0 0
      %2360 = vmatprep.subr.bf16.mxu0 0
      %2361 = vmatpush1.bf16.msra.mxu0 0
      %2362 = vmatprep.subr.bf16.mxu0 0
      %2363 = vmatpush1.bf16.msra.mxu0 0
      %2364 = vmatprep.subr.bf16.mxu0 0
      %2365 = vmatpush1.bf16.msra.mxu0 0
      %2366 = vmatprep.subr.bf16.mxu0 0
      %2367 = vmatpush1.bf16.msra.mxu0 0
      %2368 = vmatprep.subr.bf16.mxu0 0
      %2369 = vmatpush1.bf16.msra.mxu0 0
      %2370 = vmatprep.subr.bf16.mxu0 0
      %2371 = vmatpush1.bf16.msra.mxu0 0
      %2372 = vmatprep.subr.bf16.mxu0 0
      %2373 = vmatpush1.bf16.msra.mxu0 0
      %2374 = vmatprep.subr.bf16.mxu0 0
      %2375 = vmatpush1.bf16.msra.mxu0 0
      %2376 = vmatprep.mubr.bf16.mxu0 0
      %2377 = vmatmul.mubr.bf16.gmra.mrb[0].mxu0 %v2342
      %v2378 = vpop.f32.mrb[0].mxu0
      %v2379 = vadd.f32 %v2339, %v2378
      %v2380 = vpop.f32.mrb[0].mxu0
      %v2381 = vadd.f32 %v2339, %v2380
      %v2382 = vpop.f32.mrb[0].mxu0
      %v2383 = vpop.f32.mrb[0].mxu0
      %2384 = vdwg.mxu0
      %2385 = vmatprep.subr.bf16.mxu0 %v2306
      %2386 = vmatpush1.bf16.msra.mxu0 %v2305
      %2387 = vmatprep.subr.bf16.mxu0 %v2314
      %2388 = vmatpush1.bf16.msra.mxu0 %v2313
      %2389 = vmatprep.subr.bf16.mxu0 %v2322
      %2390 = vmatpush1.bf16.msra.mxu0 %v2321
      %2391 = vmatprep.subr.bf16.mxu0 %v2330
      %2392 = vmatpush1.bf16.msra.mxu0 %v2329
      %2393 = vmatprep.subr.bf16.mxu0 0
      %2394 = vmatpush1.bf16.msra.mxu0 0
      %2395 = vmatprep.subr.bf16.mxu0 0
      %2396 = vmatpush1.bf16.msra.mxu0 0
      %2397 = vmatprep.subr.bf16.mxu0 0
      %2398 = vmatpush1.bf16.msra.mxu0 0
      %2399 = vmatprep.subr.bf16.mxu0 0
      %2400 = vmatpush1.bf16.msra.mxu0 0
      %2401 = vmatprep.subr.bf16.mxu0 0
      %2402 = vmatpush1.bf16.msra.mxu0 0
      %2403 = vmatprep.subr.bf16.mxu0 0
      %2404 = vmatpush1.bf16.msra.mxu0 0
      %2405 = vmatprep.subr.bf16.mxu0 0
      %2406 = vmatpush1.bf16.msra.mxu0 0
      %2407 = vmatprep.subr.bf16.mxu0 0
      %2408 = vmatpush1.bf16.msra.mxu0 0
      %2409 = vmatprep.subr.bf16.mxu0 0
      %2410 = vmatpush1.bf16.msra.mxu0 0
      %2411 = vmatprep.subr.bf16.mxu0 0
      %2412 = vmatpush1.bf16.msra.mxu0 0
      %2413 = vmatprep.subr.bf16.mxu0 0
      %2414 = vmatpush1.bf16.msra.mxu0 0
      %2415 = vmatprep.subr.bf16.mxu0 0
      %2416 = vmatpush1.bf16.msra.mxu0 0
      %2417 = vmatprep.mubr.bf16.mxu0 0
      %2418 = vmatmul.mubr.bf16.gmra.mrb[0].mxu0 %v2342
      %v2419 = vpop.f32.mrb[0].mxu0
      %v2420 = vadd.f32 %v2339, %v2419
      %v2421 = vpop.f32.mrb[0].mxu0
      %v2422 = vadd.f32 %v2339, %v2421
      %v2423 = vpop.f32.mrb[0].mxu0
      %v2424 = vpop.f32.mrb[0].mxu0
      %2425 = vdwg.mxu0
      %2426 = vmatprep.subr.bf16.mxu0 %v2308
      %2427 = vmatpush1.bf16.msra.mxu0 %v2307
      %2428 = vmatprep.subr.bf16.mxu0 %v2316
      %2429 = vmatpush1.bf16.msra.mxu0 %v2315
      %2430 = vmatprep.subr.bf16.mxu0 %v2324
      %2431 = vmatpush1.bf16.msra.mxu0 %v2323
      %2432 = vmatprep.subr.bf16.mxu0 %v2332
      %2433 = vmatpush1.bf16.msra.mxu0 %v2331
      %2434 = vmatprep.subr.bf16.mxu0 0
      %2435 = vmatpush1.bf16.msra.mxu0 0
      %2436 = vmatprep.subr.bf16.mxu0 0
      %2437 = vmatpush1.bf16.msra.mxu0 0
      %2438 = vmatprep.subr.bf16.mxu0 0
      %2439 = vmatpush1.bf16.msra.mxu0 0
      %2440 = vmatprep.subr.bf16.mxu0 0
      %2441 = vmatpush1.bf16.msra.mxu0 0
      %2442 = vmatprep.subr.bf16.mxu0 0
      %2443 = vmatpush1.bf16.msra.mxu0 0
      %2444 = vmatprep.subr.bf16.mxu0 0
      %2445 = vmatpush1.bf16.msra.mxu0 0
      %2446 = vmatprep.subr.bf16.mxu0 0
      %2447 = vmatpush1.bf16.msra.mxu0 0
      %2448 = vmatprep.subr.bf16.mxu0 0
      %2449 = vmatpush1.bf16.msra.mxu0 0
      %2450 = vmatprep.subr.bf16.mxu0 0
      %2451 = vmatpush1.bf16.msra.mxu0 0
      %2452 = vmatprep.subr.bf16.mxu0 0
      %2453 = vmatpush1.bf16.msra.mxu0 0
      %2454 = vmatprep.subr.bf16.mxu0 0
      %2455 = vmatpush1.bf16.msra.mxu0 0
      %2456 = vmatprep.subr.bf16.mxu0 0
      %2457 = vmatpush1.bf16.msra.mxu0 0
      %2458 = vmatprep.mubr.bf16.mxu0 0
      %2459 = vmatmul.mubr.bf16.gmra.mrb[0].mxu0 %v2342
      %v2460 = vpop.f32.mrb[0].mxu0
      %v2461 = vadd.f32 %v2339, %v2460
      %v2462 = vpop.f32.mrb[0].mxu0
      %v2463 = vadd.f32 %v2339, %v2462
      %v2464 = vpop.f32.mrb[0].mxu0
      %v2465 = vpop.f32.mrb[0].mxu0
      %2466 = vdwg.mxu0
      %2467 = vmatprep.subr.bf16.mxu0 %v2310
      %2468 = vmatpush1.bf16.msra.mxu0 %v2309
      %2469 = vmatprep.subr.bf16.mxu0 %v2318
      %2470 = vmatpush1.bf16.msra.mxu0 %v2317
      %2471 = vmatprep.subr.bf16.mxu0 %v2326
      %2472 = vmatpush1.bf16.msra.mxu0 %v2325
      %2473 = vmatprep.subr.bf16.mxu0 %v2334
      %2474 = vmatpush1.bf16.msra.mxu0 %v2333
      %2475 = vmatprep.subr.bf16.mxu0 0
      %2476 = vmatpush1.bf16.msra.mxu0 0
      %2477 = vmatprep.subr.bf16.mxu0 0
      %2478 = vmatpush1.bf16.msra.mxu0 0
      %2479 = vmatprep.subr.bf16.mxu0 0
      %2480 = vmatpush1.bf16.msra.mxu0 0
      %2481 = vmatprep.subr.bf16.mxu0 0
      %2482 = vmatpush1.bf16.msra.mxu0 0
      %2483 = vmatprep.subr.bf16.mxu0 0
      %2484 = vmatpush1.bf16.msra.mxu0 0
      %2485 = vmatprep.subr.bf16.mxu0 0
      %2486 = vmatpush1.bf16.msra.mxu0 0
      %2487 = vmatprep.subr.bf16.mxu0 0
      %2488 = vmatpush1.bf16.msra.mxu0 0
      %2489 = vmatprep.subr.bf16.mxu0 0
      %2490 = vmatpush1.bf16.msra.mxu0 0
      %2491 = vmatprep.subr.bf16.mxu0 0
      %2492 = vmatpush1.bf16.msra.mxu0 0
      %2493 = vmatprep.subr.bf16.mxu0 0
      %2494 = vmatpush1.bf16.msra.mxu0 0
      %2495 = vmatprep.subr.bf16.mxu0 0
      %2496 = vmatpush1.bf16.msra.mxu0 0
      %2497 = vmatprep.subr.bf16.mxu0 0
      %2498 = vmatpush1.bf16.msra.mxu0 0
      %2499 = vmatprep.mubr.bf16.mxu0 0
      %2500 = vmatmul.mubr.bf16.gmra.mrb[0].mxu0 %v2342
      %v2501 = vpop.f32.mrb[0].mxu0
      %v2502 = vadd.f32 %v2339, %v2501
      %v2503 = vpop.f32.mrb[0].mxu0
      %v2504 = vadd.f32 %v2339, %v2503
      %v2505 = vpop.f32.mrb[0].mxu0
      %v2506 = vpop.f32.mrb[0].mxu0
      %2507 = vdwg.mxu0
      %v2508 = vxor.u32 %v2379, 2147483648
      %v2509 = vxor.u32 %v2381, 2147483648
      %v2510 = vxor.u32 %v2420, 2147483648
      %v2511 = vxor.u32 %v2422, 2147483648
      %v2512 = vxor.u32 %v2461, 2147483648
      %v2513 = vxor.u32 %v2463, 2147483648
      %v2514 = vxor.u32 %v2502, 2147483648
      %v2515 = vxor.u32 %v2504, 2147483648
      %v2516 = vmul.f32 %v2508, 1.442695
      %v2517 = vpow.pop %v2516
      %v2518 = vmul.f32 %v2509, 1.442695
      %v2519 = vpow.pop %v2518
      %v2520 = vmul.f32 %v2510, 1.442695
      %v2521 = vpow.pop %v2520
      %v2522 = vmul.f32 %v2511, 1.442695
      %v2523 = vpow.pop %v2522
      %v2524 = vmul.f32 %v2512, 1.442695
      %v2525 = vpow.pop %v2524
      %v2526 = vmul.f32 %v2513, 1.442695
      %v2527 = vpow.pop %v2526
      %v2528 = vmul.f32 %v2514, 1.442695
      %v2529 = vpow.pop %v2528
      %v2530 = vmul.f32 %v2515, 1.442695
      %v2531 = vpow.pop %v2530
      %v2532 = vadd.f32 %v2517, 1.0
      %v2533 = vadd.f32 %v2519, 1.0
      %v2534 = vadd.f32 %v2521, 1.0
      %v2535 = vadd.f32 %v2523, 1.0
      %v2536 = vadd.f32 %v2525, 1.0
      %v2537 = vadd.f32 %v2527, 1.0
      %v2538 = vadd.f32 %v2529, 1.0
      %v2539 = vadd.f32 %v2531, 1.0
      %v2540 = vrcp.pop %v2532
      %v2541 = vmul.f32 1.0, %v2540
      %v2542 = vrcp.pop %v2533
      %v2543 = vmul.f32 1.0, %v2542
      %v2544 = vrcp.pop %v2534
      %v2545 = vmul.f32 1.0, %v2544
      %v2546 = vrcp.pop %v2535
      %v2547 = vmul.f32 1.0, %v2546
      %v2548 = vrcp.pop %v2536
      %v2549 = vmul.f32 1.0, %v2548
      %v2550 = vrcp.pop %v2537
      %v2551 = vmul.f32 1.0, %v2550
      %v2552 = vrcp.pop %v2538
      %v2553 = vmul.f32 1.0, %v2552
      %v2554 = vrcp.pop %v2539
      %v2555 = vmul.f32 1.0, %v2554
      %2556 = vst [vmem:[%s280] sm:$0xff] %v2541
      %2557 = vst [vmem:[%s280 + $0x8] sm:$0xff] %v2543
      %2558 = vst [vmem:[%s280 + $0x10] sm:$0xff] %v2545
      %2559 = vst [vmem:[%s280 + $0x18] sm:$0xff] %v2547
      %2560 = vst [vmem:[%s280 + $0x20] sm:$0xff] %v2549
      %2561 = vst [vmem:[%s280 + $0x28] sm:$0xff] %v2551
      %2562 = vst [vmem:[%s280 + $0x30] sm:$0xff] %v2553
      %2563 = vst [vmem:[%s280 + $0x38] sm:$0xff] %v2555
      %s2564 = smul.u32 8, %s18
      %p2565 = scmp.lt.s32.totalorder %s2564, 63
      %s2566 = scalar_select %p2565, %s2564, 63
      %s2567 = smul.addr %s2566, 8
      %s2568 = scalar_lea.vmem %s7, %s2567
      // Predicated region
      $region49: #{neulf_forward.1} parent=47 // pred_check
        %p2569 = pneg %p188
      $region50: #{neulf_forward.1} parent=47 // pred_check_branch
        %2571 = sbr.rel (%p2569) target = $region52
      $region51: #{neulf_forward.1} parent=47 // pred_region
        %s2572 = smul.u32 8, %s18
      $region52: #{neulf_forward.1} parent=47 // pred_fallthru
        _
    $region48: #{neulf_forward.1} parent=5 // pred_fallthru
      _
    %p2573 = scmp.le.s32.totalorder 2, %s13
    // Predicated region
    $region53: #{neulf_forward.1} parent=5 // pred_check
      %p2574 = pneg %p2573
    $region54: #{neulf_forward.1} parent=5 // pred_check_branch
      %2576 = sbr.rel (%p2574) target = $region56
    $region55: #{neulf_forward.1} parent=5 // pred_region
      %s2577 = ssub.s32 %s13, 2
      // Predicated region
      $region57: #{neulf_forward.1} parent=55 // pred_check
        %p2578 = pneg %p194
      $region58: #{neulf_forward.1} parent=55 // pred_check_branch
        %2580 = sbr.rel (%p2578) target = $region60
      $region59: #{neulf_forward.1} parent=55 // pred_region
        %s2581 = smul.u32 8, %s19
        %p2582 = scmp.lt.s32.totalorder %s2581, 63
        %s2583 = scalar_select %p2582, %s2581, 63
        %s2584 = smul.addr %s2583, 8
        %s2585 = scalar_lea.vmem %s7, %s2584
      $region60: #{neulf_forward.1} parent=55 // pred_fallthru
        _
    $region56: #{neulf_forward.1} parent=5 // pred_fallthru
      _
  $region6: #{neulf_forward.1} parent=0 // loop_footer
    %s17 = sadd.s32 1, %s13
  $region7: #{neulf_forward.1} parent=0 // loop_footer_branch
    %12 = sbr.rel target = $region3
  $region8: #{neulf_forward.1} parent=0 // loop_exit
    _

</llo_original>
